<compile_context>
chip_gen: v7x
topology: tpu7x:2x2x1
jax: 0.10.0
libtpu: 0.0.40
codegen_flags: <defaults>
</compile_context>

<pallas_src>
import numpy as np
import jax
import jax.numpy as jnp
from jax import lax
from jax.experimental import pallas as pl
from jax.experimental.pallas import tpu as pltpu

_EDGE = 16   # aligned zero margin rows for the shifted-tap scratch buffers


def _conv_roll(h, w_ref, b_ref, k, pad, cdt):
    """Conv1d over stacked rows as ONE fused-tap matmul (im2col via XLU rolls)."""
    rows = h.shape[0]
    taps = []
    for t in range(k):
        s = (pad - t) % rows                 # taps[t][p] == h[(p + t - pad) % rows]
        taps.append(h if s == 0 else pltpu.roll(h, shift=s, axis=0))
    win = jnp.concatenate(taps, axis=-1).astype(cdt)            # (rows, k*cin)
    return jnp.dot(win, w_ref[...], preferred_element_type=jnp.float32) + b_ref[...]


def _conv_scratch(h, scr_ref, w_ref, b_ref, k, pad, cdt):
    """Conv1d as k accumulated matmuls over shifted slices of a VMEM scratch.

    Avoids the XLU rolls and the wide im2col concat buffer (review item for
    the C>=32 layers).  scr_ref has shape (rows + 2*_EDGE, cin); edge rows are
    zeroed so boundary taps see zero padding.  Stores are _EDGE-aligned.
    """
    rows, cin = h.shape
    cout = w_ref.shape[-1]
    scr_ref[0:_EDGE, :] = jnp.zeros((_EDGE, cin), cdt)
    scr_ref[_EDGE + rows:_EDGE + rows + _EDGE, :] = jnp.zeros((_EDGE, cin), cdt)
    scr_ref[_EDGE:_EDGE + rows, :] = h.astype(cdt)
    acc = jnp.zeros((rows, cout), jnp.float32)
    for t in range(k):
        off = _EDGE - pad + t                 # scr row off+p  ==  h row p + t - pad
        acc = acc + jnp.dot(scr_ref[off:off + rows, :],
                            w_ref[t * cin:(t + 1) * cin, :],
                            preferred_element_type=jnp.float32)
    return acc + b_ref[...]


def cnn_forward(x_ncl, params, use_bf16=True, batch_block=128):
    """x_ncl: (N, 2, L) float32 (PyTorch Conv1d NCL layout). Returns (N, 2) f32."""
    (w1, b1), (w2, b2), (w3, b3), (w4, b4), (Wl, bl) = params
    N, Cin, L = x_ncl.shape
    assert L % 2 == 0
    Lh = L // 2
    PAD1, PAD2 = 2, 1
    K1 = 5
    cdt = jnp.bfloat16 if use_bf16 else jnp.float32
    align = 16 if use_bf16 else 8            # sublane tile (bf16 packs pairs)

    # Batch block: whole batch when tiny, else a multiple-of-8 divisor of N.
    NB = N
    if N > batch_block:
        for d in range(batch_block, 7, -1):
            if N % d == 0 and d % 8 == 0:
                NB = d
                break

    # Lp1 == 2*Lp2 so MaxPool1d(2) is a stride-2 row selection; NB*Lp2 aligned
    # so every batch block is sublane-tile aligned.
    Lp2 = Lh + 2 * PAD2
    while (NB * Lp2) % align:
        Lp2 += 1
    Lp1 = 2 * Lp2
    R1b, R2b = NB * Lp1, NB * Lp2            # stacked rows per batch block

    # ---- wrapper-side layout glue (plain XLA / numpy, runs once) ----
    # Stacked, per-sample zero-padded input, then conv1 im2col (+ ones column
    # so conv1's bias rides the matmul).
    x_nlc = jnp.transpose(x_ncl, (0, 2, 1)).astype(jnp.float32)          # (N, L, Cin)
    x_stk = jnp.zeros((N, Lp1, Cin), jnp.float32).at[:, PAD1:PAD1 + L, :].set(x_nlc)
    xe = jnp.pad(x_stk, ((0, 0), (PAD1, PAD1), (0, 0)))
    taps = [xe[:, t:t + Lp1, :] for t in range(K1)]                      # offset t-PAD1
    ones = jnp.ones((N, Lp1, 1), jnp.float32)
    x_win = jnp.concatenate(taps + [ones], axis=-1).reshape(N * Lp1, K1 * Cin + 1)
    x_win = x_win.astype(cdt)
    KC1 = K1 * Cin + 1

    mask1 = np.zeros((R1b, 1), np.float32)   # valid rows, stage 1 (per block)
    mask2 = np.zeros((R2b, 1), np.float32)   # valid rows, stage 2 (per block)
    for n in range(NB):
        mask1[n * Lp1 + PAD1:n * Lp1 + PAD1 + L, 0] = 1.0
        mask2[n * Lp2 + PAD2:n * Lp2 + PAD2 + Lh, 0] = 1.0

    def fuse_w(w):    # (Cout, Cin, K) -> (K*Cin, Cout), tap-major rows
        cout, cin, k = w.shape
        return jnp.transpose(w, (2, 1, 0)).reshape(k * cin, cout).astype(cdt)

    def row(b):
        return b.reshape(1, -1).astype(jnp.float32)

    w1f = jnp.concatenate([fuse_w(w1), b1.reshape(1, -1).astype(cdt)], axis=0)  # (11, 16)

    args = (x_win, w1f,
            fuse_w(w2), row(b2), fuse_w(w3), row(b3), fuse_w(w4), row(b4),
            jnp.transpose(Wl).astype(cdt), row(bl),
            jnp.asarray(mask1), jnp.asarray(mask2))

    def kernel(x_ref, w1_ref, w2_ref, b2_ref, w3_ref, b3_ref, w4_ref, b4_ref,
               wl_ref, bl_ref, m1_ref, m2_ref, out_ref,
               h2_scr, c3_scr, c4_scr, h4_scr):
        # conv1 (bias folded into the matmul via the ones column) + ReLU + mask.
        h = jnp.dot(x_ref[...], w1_ref[...], preferred_element_type=jnp.float32)
        h = jnp.maximum(h, 0.0) * m1_ref[...]                            # (R1b, 16)

        # conv2: fused-tap roll im2col, one MXU matmul, ReLU.
        h = _conv_roll(h, w2_ref, b2_ref, k=3, pad=1, cdt=cdt)
        h = jnp.maximum(h, 0.0)                                          # (R1b, 32)

        # MaxPool1d(2): pairwise max (roll + max), then a stride-2 sublane
        # read picks rows 2r (Lp1 == 2*Lp2 makes that exactly the stage-2
        # layout); mask2 re-zeroes pad rows so conv3's zero padding holds.
        h2_scr[...] = jnp.maximum(h, pltpu.roll(h, shift=R1b - 1, axis=0))
        pooled = h2_scr[pl.ds(0, R2b, 2), :] * m2_ref[...]               # (R2b, 32)

        # conv3 / conv4: accumulated shifted-slice matmuls (no rolls, no wide
        # concat buffer).
        h = _conv_scratch(pooled, c3_scr, w3_ref, b3_ref, k=3, pad=1, cdt=cdt)
        h = jnp.maximum(h, 0.0) * m2_ref[...]                            # (R2b, 64)
        h = _conv_scratch(h, c4_scr, w4_ref, b4_ref, k=3, pad=1, cdt=cdt)
        h4_scr[...] = jnp.maximum(h, 0.0)                                # (R2b, 64)

        # AdaptiveAvgPool1d(1) + Flatten: per-sample mean over the Lh valid
        # rows via stride-Lp2 sublane reads (pad rows never touched).
        acc = h4_scr[pl.ds(PAD2, NB, Lp2), :]
        for j in range(1, Lh):
            acc = acc + h4_scr[pl.ds(PAD2 + j, NB, Lp2), :]
        pooled_b = acc * (1.0 / Lh)                                      # (NB, 64)

        # TODO(synk): nn.Dropout(0.3) is identity in eval mode; training-mode
        # stochastic masking is not implemented here.
        # NOTE: last dim 2 is lane-sparse; at large N emit (2, N) or pooled
        # (NB, 64) instead for lane-dense stores (irrelevant at toy batch).
        out_ref[...] = (jnp.dot(pooled_b.astype(cdt), wl_ref[...],
                                preferred_element_type=jnp.float32)
                        + bl_ref[...]).astype(out_ref.dtype)

    const = lambda b: (0, 0)                 # weights/biases/masks stay resident
    grid_spec = pltpu.PrefetchScalarGridSpec(
        num_scalar_prefetch=0,
        grid=(N // NB,),
        in_specs=[pl.BlockSpec((R1b, KC1), lambda b: (b, 0))]
                 + [pl.BlockSpec(a.shape, const) for a in args[1:]],
        out_specs=pl.BlockSpec((NB, 2), lambda b: (b, 0)),
        scratch_shapes=[
            pltpu.VMEM((R1b, 32), jnp.float32),            # maxpool source
            pltpu.VMEM((R2b + 2 * _EDGE, 32), cdt),        # conv3 tap scratch
            pltpu.VMEM((R2b + 2 * _EDGE, 64), cdt),        # conv4 tap scratch
            pltpu.VMEM((R2b, 64), jnp.float32),            # avg-pool source
        ],
    )

    return pl.pallas_call(
        kernel,
        out_shape=jax.ShapeDtypeStruct((N, 2), jnp.float32),
        grid_spec=grid_spec,
        compiler_params=pltpu.CompilerParams(
            dimension_semantics=("parallel",),
            vmem_limit_bytes=32 * 1024 * 1024),
    )(*args)


def ref_forward(x, params):
    """Pure-JAX reference matching PyTorch semantics (eval mode)."""
    (w1, b1), (w2, b2), (w3, b3), (w4, b4), (Wl, bl) = params

    def conv(h, w, b, pad):
        y = lax.conv_general_dilated(h, w, window_strides=(1,),
                                     padding=[(pad, pad)],
                                     dimension_numbers=('NCH', 'OIH', 'NCH'))
        return y + b[None, :, None]

    h = jax.nn.relu(conv(x, w1, b1, 2))
    h = jax.nn.relu(conv(h, w2, b2, 1))
    N, C, L = h.shape
    h = jnp.max(h.reshape(N, C, L // 2, 2), axis=-1)        # MaxPool1d(2)
    h = jax.nn.relu(conv(h, w3, b3, 1))
    h = jax.nn.relu(conv(h, w4, b4, 1))
    h = jnp.mean(h, axis=-1)                                 # AdaptiveAvgPool1d(1)+Flatten
    return h @ Wl.T + bl                                     # Linear(64, 2)


def init_params(key):
    """Deterministic synthetic init with PyTorch parameter shapes."""
    ks = jax.random.split(key, 10)

    def conv_p(kw, kb, cout, cin, k):
        s = 1.0 / np.sqrt(cin * k)
        return (jax.random.uniform(kw, (cout, cin, k), jnp.float32, -s, s),
                jax.random.uniform(kb, (cout,), jnp.float32, -s, s))

    p1 = conv_p(ks[0], ks[1], 16, 2, 5)
    p2 = conv_p(ks[2], ks[3], 32, 16, 3)
    p3 = conv_p(ks[4], ks[5], 64, 32, 3)
    p4 = conv_p(ks[6], ks[7], 64, 64, 3)
    sl = 1.0 / np.sqrt(64)
    plin = (jax.random.uniform(ks[8], (2, 64), jnp.float32, -sl, sl),
            jax.random.uniform(ks[9], (2,), jnp.float32, -sl, sl))
    return (p1, p2, p3, p4, plin)


if __name__ == "__main__":
    key = jax.random.PRNGKey(0)
    pkey, xkey = jax.random.split(key)
    params = init_params(pkey)
    # Input matches PyTorch Conv1d NCL convention: (batch=2, channels=2, length=16)
    x = jax.random.normal(xkey, (2, 2, 16), jnp.float32)

    ref = ref_forward(x, params)

    # f32 path: bit-exact layout/semantics check against the reference.
    out_f32 = jax.block_until_ready(cnn_forward(x, params, use_bf16=False))
    np.testing.assert_allclose(np.asarray(out_f32), np.asarray(ref),
                               rtol=2e-4, atol=2e-4)

    # bf16 matmul-operand path (default / recommended on v6e & v7x).
    out_bf16 = jax.block_until_ready(cnn_forward(x, params, use_bf16=True))
    np.testing.assert_allclose(np.asarray(out_bf16), np.asarray(ref),
                               rtol=2e-2, atol=2e-2)

    print("KERNEL_OK")
</pallas_src>

<mosaic_0001>
module attributes {stable_mosaic.version = 11 : i64} {
  func.func @kernel(%arg0: i32, %arg1: memref<48x11xf32, #tpu.memory_space<vmem>>, %arg2: memref<11x16xf32, #tpu.memory_space<vmem>>, %arg3: memref<48x32xf32, #tpu.memory_space<vmem>>, %arg4: memref<1x32xf32, #tpu.memory_space<vmem>>, %arg5: memref<96x64xf32, #tpu.memory_space<vmem>>, %arg6: memref<1x64xf32, #tpu.memory_space<vmem>>, %arg7: memref<192x64xf32, #tpu.memory_space<vmem>>, %arg8: memref<1x64xf32, #tpu.memory_space<vmem>>, %arg9: memref<64x2xf32, #tpu.memory_space<vmem>>, %arg10: memref<1x2xf32, #tpu.memory_space<vmem>>, %arg11: memref<48x1xf32, #tpu.memory_space<vmem>>, %arg12: memref<24x1xf32, #tpu.memory_space<vmem>>, %arg13: memref<2x2xf32, #tpu.memory_space<vmem>>, %arg14: memref<48x32xf32, #tpu.memory_space<vmem>>, %arg15: memref<56x32xf32, #tpu.memory_space<vmem>>, %arg16: memref<56x64xf32, #tpu.memory_space<vmem>>, %arg17: memref<24x64xf32, #tpu.memory_space<vmem>>) attributes {dimension_semantics = [#tpu.dimension_semantics<parallel>], iteration_bounds = array<i64: 1>, scalar_prefetch = 0 : i64, scratch_operands = 4 : i64, tpu.core_type = #tpu.core_type<tc>, window_params = [{transform_indices = @transform_0, window_bounds = array<i64: 48, 11>}, {pipeline_mode = #tpu.pipeline_mode<synchronous>, transform_indices = @transform_1, window_bounds = array<i64: 11, 16>}, {pipeline_mode = #tpu.pipeline_mode<synchronous>, transform_indices = @transform_2, window_bounds = array<i64: 48, 32>}, {pipeline_mode = #tpu.pipeline_mode<synchronous>, transform_indices = @transform_3, window_bounds = array<i64: 1, 32>}, {pipeline_mode = #tpu.pipeline_mode<synchronous>, transform_indices = @transform_4, window_bounds = array<i64: 96, 64>}, {pipeline_mode = #tpu.pipeline_mode<synchronous>, transform_indices = @transform_5, window_bounds = array<i64: 1, 64>}, {pipeline_mode = #tpu.pipeline_mode<synchronous>, transform_indices = @transform_6, window_bounds = array<i64: 192, 64>}, {pipeline_mode = #tpu.pipeline_mode<synchronous>, transform_indices = @transform_7, window_bounds = array<i64: 1, 64>}, {pipeline_mode = #tpu.pipeline_mode<synchronous>, transform_indices = @transform_8, window_bounds = array<i64: 64, 2>}, {pipeline_mode = #tpu.pipeline_mode<synchronous>, transform_indices = @transform_9, window_bounds = array<i64: 1, 2>}, {pipeline_mode = #tpu.pipeline_mode<synchronous>, transform_indices = @transform_10, window_bounds = array<i64: 48, 1>}, {pipeline_mode = #tpu.pipeline_mode<synchronous>, transform_indices = @transform_11, window_bounds = array<i64: 24, 1>}, {transform_indices = @transform_12, window_bounds = array<i64: 2, 2>}]} {
    %c0 = arith.constant 0 : index
    %c0_0 = arith.constant 0 : index
    %0 = vector.load %arg1[%c0, %c0_0] : memref<48x11xf32, #tpu.memory_space<vmem>>, vector<48x11xf32>
    %c0_1 = arith.constant 0 : index
    %c0_2 = arith.constant 0 : index
    %1 = vector.load %arg2[%c0_1, %c0_2] : memref<11x16xf32, #tpu.memory_space<vmem>>, vector<11x16xf32>
    %cst = arith.constant dense<0.000000e+00> : vector<48x16xf32>
    %2 = tpu.matmul %0, %1, %cst {dimension_numbers = #tpu.dot_dimension_numbers<[1], [0], [0], [1], [0, 0, 1, 1], [], []>} : vector<48x11xf32>, vector<11x16xf32>, vector<48x16xf32> -> vector<48x16xf32>
    %cst_3 = arith.constant 0.000000e+00 : f32
    %3 = vector.broadcast %cst_3 : f32 to vector<48x16xf32>
    %4 = arith.maximumf %2, %3 : vector<48x16xf32>
    %c0_4 = arith.constant 0 : index
    %c0_5 = arith.constant 0 : index
    %5 = vector.load %arg11[%c0_4, %c0_5] : memref<48x1xf32, #tpu.memory_space<vmem>>, vector<48x1xf32>
    %6 = vector.broadcast %5 : vector<48x1xf32> to vector<48x16xf32>
    %7 = arith.mulf %4, %6 : vector<48x16xf32>
    %c1_i32 = arith.constant 1 : i32
    %8 = tpu.dynamic_rotate %7 by %c1_i32 dim 0 : vector<48x16xf32>, i32 -> vector<48x16xf32>
    %c47_i32 = arith.constant 47 : i32
    %9 = tpu.dynamic_rotate %7 by %c47_i32 dim 0 : vector<48x16xf32>, i32 -> vector<48x16xf32>
    %10 = tpu.concatenate %8, %7, %9 in 1 : vector<48x16xf32>, vector<48x16xf32>, vector<48x16xf32> -> vector<48x48xf32>
    %c0_6 = arith.constant 0 : index
    %c0_7 = arith.constant 0 : index
    %11 = vector.load %arg3[%c0_6, %c0_7] : memref<48x32xf32, #tpu.memory_space<vmem>>, vector<48x32xf32>
    %cst_8 = arith.constant dense<0.000000e+00> : vector<48x32xf32>
    %12 = tpu.matmul %10, %11, %cst_8 {dimension_numbers = #tpu.dot_dimension_numbers<[1], [0], [0], [1], [0, 0, 1, 1], [], []>} : vector<48x48xf32>, vector<48x32xf32>, vector<48x32xf32> -> vector<48x32xf32>
    %c0_9 = arith.constant 0 : index
    %c0_10 = arith.constant 0 : index
    %13 = vector.load %arg4[%c0_9, %c0_10] : memref<1x32xf32, #tpu.memory_space<vmem>>, vector<1x32xf32>
    %14 = vector.broadcast %13 : vector<1x32xf32> to vector<48x32xf32>
    %15 = arith.addf %12, %14 : vector<48x32xf32>
    %cst_11 = arith.constant 0.000000e+00 : f32
    %16 = vector.broadcast %cst_11 : f32 to vector<48x32xf32>
    %17 = arith.maximumf %15, %16 : vector<48x32xf32>
    %c47_i32_12 = arith.constant 47 : i32
    %18 = tpu.dynamic_rotate %17 by %c47_i32_12 dim 0 : vector<48x32xf32>, i32 -> vector<48x32xf32>
    %19 = arith.maximumf %17, %18 : vector<48x32xf32>
    %c0_13 = arith.constant 0 : index
    %c0_14 = arith.constant 0 : index
    %20 = vector.load %arg14[%c0_13, %c0_14] : memref<48x32xf32, #tpu.memory_space<vmem>>, vector<48x32xf32>
    tpu.vector_store %arg14[%c0_13, %c0_14], %19 {strides = array<i32>} : memref<48x32xf32, #tpu.memory_space<vmem>>, vector<48x32xf32>,
    %c0_15 = arith.constant 0 : index
    %c0_16 = arith.constant 0 : index
    %21 = tpu.strided_load %arg14[%c0_15, %c0_16] {strides = array<i32: 2, 1>} : memref<48x32xf32, #tpu.memory_space<vmem>>, vector<24x32xf32>
    %c0_17 = arith.constant 0 : index
    %c0_18 = arith.constant 0 : index
    %22 = vector.load %arg12[%c0_17, %c0_18] : memref<24x1xf32, #tpu.memory_space<vmem>>, vector<24x1xf32>
    %23 = vector.broadcast %22 : vector<24x1xf32> to vector<24x32xf32>
    %24 = arith.mulf %21, %23 : vector<24x32xf32>
    %cst_19 = arith.constant 0.000000e+00 : f32
    %25 = vector.broadcast %cst_19 : f32 to vector<16x32xf32>
    %c0_20 = arith.constant 0 : index
    %c0_21 = arith.constant 0 : index
    %26 = vector.load %arg15[%c0_20, %c0_21] : memref<56x32xf32, #tpu.memory_space<vmem>>, vector<16x32xf32>
    tpu.vector_store %arg15[%c0_20, %c0_21], %25 {strides = array<i32>} : memref<56x32xf32, #tpu.memory_space<vmem>>, vector<16x32xf32>,
    %cst_22 = arith.constant 0.000000e+00 : f32
    %27 = vector.broadcast %cst_22 : f32 to vector<16x32xf32>
    %c40 = arith.constant 40 : index
    %c0_23 = arith.constant 0 : index
    %28 = vector.load %arg15[%c40, %c0_23] : memref<56x32xf32, #tpu.memory_space<vmem>>, vector<16x32xf32>
    tpu.vector_store %arg15[%c40, %c0_23], %27 {strides = array<i32>} : memref<56x32xf32, #tpu.memory_space<vmem>>, vector<16x32xf32>,
    %c16 = arith.constant 16 : index
    %c0_24 = arith.constant 0 : index
    %29 = vector.load %arg15[%c16, %c0_24] : memref<56x32xf32, #tpu.memory_space<vmem>>, vector<24x32xf32>
    tpu.vector_store %arg15[%c16, %c0_24], %24 {strides = array<i32>} : memref<56x32xf32, #tpu.memory_space<vmem>>, vector<24x32xf32>,
    %cst_25 = arith.constant 0.000000e+00 : f32
    %30 = vector.broadcast %cst_25 : f32 to vector<24x64xf32>
    %c15 = arith.constant 15 : index
    %c0_26 = arith.constant 0 : index
    %31 = vector.load %arg15[%c15, %c0_26] : memref<56x32xf32, #tpu.memory_space<vmem>>, vector<24x32xf32>
    %c0_27 = arith.constant 0 : index
    %c0_28 = arith.constant 0 : index
    %32 = vector.load %arg5[%c0_27, %c0_28] : memref<96x64xf32, #tpu.memory_space<vmem>>, vector<32x64xf32>
    %cst_29 = arith.constant dense<0.000000e+00> : vector<24x64xf32>
    %33 = tpu.matmul %31, %32, %cst_29 {dimension_numbers = #tpu.dot_dimension_numbers<[1], [0], [0], [1], [0, 0, 1, 1], [], []>} : vector<24x32xf32>, vector<32x64xf32>, vector<24x64xf32> -> vector<24x64xf32>
    %34 = arith.addf %30, %33 : vector<24x64xf32>
    %c16_30 = arith.constant 16 : index
    %c0_31 = arith.constant 0 : index
    %35 = vector.load %arg15[%c16_30, %c0_31] : memref<56x32xf32, #tpu.memory_space<vmem>>, vector<24x32xf32>
    %c32 = arith.constant 32 : index
    %c0_32 = arith.constant 0 : index
    %36 = vector.load %arg5[%c32, %c0_32] : memref<96x64xf32, #tpu.memory_space<vmem>>, vector<32x64xf32>
    %cst_33 = arith.constant dense<0.000000e+00> : vector<24x64xf32>
    %37 = tpu.matmul %35, %36, %cst_33 {dimension_numbers = #tpu.dot_dimension_numbers<[1], [0], [0], [1], [0, 0, 1, 1], [], []>} : vector<24x32xf32>, vector<32x64xf32>, vector<24x64xf32> -> vector<24x64xf32>
    %38 = arith.addf %34, %37 : vector<24x64xf32>
    %c17 = arith.constant 17 : index
    %c0_34 = arith.constant 0 : index
    %39 = vector.load %arg15[%c17, %c0_34] : memref<56x32xf32, #tpu.memory_space<vmem>>, vector<24x32xf32>
    %c64 = arith.constant 64 : index
    %c0_35 = arith.constant 0 : index
    %40 = vector.load %arg5[%c64, %c0_35] : memref<96x64xf32, #tpu.memory_space<vmem>>, vector<32x64xf32>
    %cst_36 = arith.constant dense<0.000000e+00> : vector<24x64xf32>
    %41 = tpu.matmul %39, %40, %cst_36 {dimension_numbers = #tpu.dot_dimension_numbers<[1], [0], [0], [1], [0, 0, 1, 1], [], []>} : vector<24x32xf32>, vector<32x64xf32>, vector<24x64xf32> -> vector<24x64xf32>
    %42 = arith.addf %38, %41 : vector<24x64xf32>
    %c0_37 = arith.constant 0 : index
    %c0_38 = arith.constant 0 : index
    %43 = vector.load %arg6[%c0_37, %c0_38] : memref<1x64xf32, #tpu.memory_space<vmem>>, vector<1x64xf32>
    %44 = vector.broadcast %43 : vector<1x64xf32> to vector<24x64xf32>
    %45 = arith.addf %42, %44 : vector<24x64xf32>
    %cst_39 = arith.constant 0.000000e+00 : f32
    %46 = vector.broadcast %cst_39 : f32 to vector<24x64xf32>
    %47 = arith.maximumf %45, %46 : vector<24x64xf32>
    %c0_40 = arith.constant 0 : index
    %c0_41 = arith.constant 0 : index
    %48 = vector.load %arg12[%c0_40, %c0_41] : memref<24x1xf32, #tpu.memory_space<vmem>>, vector<24x1xf32>
    %49 = vector.broadcast %48 : vector<24x1xf32> to vector<24x64xf32>
    %50 = arith.mulf %47, %49 : vector<24x64xf32>
    %cst_42 = arith.constant 0.000000e+00 : f32
    %51 = vector.broadcast %cst_42 : f32 to vector<16x64xf32>
    %c0_43 = arith.constant 0 : index
    %c0_44 = arith.constant 0 : index
    %52 = vector.load %arg16[%c0_43, %c0_44] : memref<56x64xf32, #tpu.memory_space<vmem>>, vector<16x64xf32>
    tpu.vector_store %arg16[%c0_43, %c0_44], %51 {strides = array<i32>} : memref<56x64xf32, #tpu.memory_space<vmem>>, vector<16x64xf32>,
    %cst_45 = arith.constant 0.000000e+00 : f32
    %53 = vector.broadcast %cst_45 : f32 to vector<16x64xf32>
    %c40_46 = arith.constant 40 : index
    %c0_47 = arith.constant 0 : index
    %54 = vector.load %arg16[%c40_46, %c0_47] : memref<56x64xf32, #tpu.memory_space<vmem>>, vector<16x64xf32>
    tpu.vector_store %arg16[%c40_46, %c0_47], %53 {strides = array<i32>} : memref<56x64xf32, #tpu.memory_space<vmem>>, vector<16x64xf32>,
    %c16_48 = arith.constant 16 : index
    %c0_49 = arith.constant 0 : index
    %55 = vector.load %arg16[%c16_48, %c0_49] : memref<56x64xf32, #tpu.memory_space<vmem>>, vector<24x64xf32>
    tpu.vector_store %arg16[%c16_48, %c0_49], %50 {strides = array<i32>} : memref<56x64xf32, #tpu.memory_space<vmem>>, vector<24x64xf32>,
    %cst_50 = arith.constant 0.000000e+00 : f32
    %56 = vector.broadcast %cst_50 : f32 to vector<24x64xf32>
    %c15_51 = arith.constant 15 : index
    %c0_52 = arith.constant 0 : index
    %57 = vector.load %arg16[%c15_51, %c0_52] : memref<56x64xf32, #tpu.memory_space<vmem>>, vector<24x64xf32>
    %c0_53 = arith.constant 0 : index
    %c0_54 = arith.constant 0 : index
    %58 = vector.load %arg7[%c0_53, %c0_54] : memref<192x64xf32, #tpu.memory_space<vmem>>, vector<64x64xf32>
    %cst_55 = arith.constant dense<0.000000e+00> : vector<24x64xf32>
    %59 = tpu.matmul %57, %58, %cst_55 {dimension_numbers = #tpu.dot_dimension_numbers<[1], [0], [0], [1], [0, 0, 1, 1], [], []>} : vector<24x64xf32>, vector<64x64xf32>, vector<24x64xf32> -> vector<24x64xf32>
    %60 = arith.addf %56, %59 : vector<24x64xf32>
    %c16_56 = arith.constant 16 : index
    %c0_57 = arith.constant 0 : index
    %61 = vector.load %arg16[%c16_56, %c0_57] : memref<56x64xf32, #tpu.memory_space<vmem>>, vector<24x64xf32>
    %c64_58 = arith.constant 64 : index
    %c0_59 = arith.constant 0 : index
    %62 = vector.load %arg7[%c64_58, %c0_59] : memref<192x64xf32, #tpu.memory_space<vmem>>, vector<64x64xf32>
    %cst_60 = arith.constant dense<0.000000e+00> : vector<24x64xf32>
    %63 = tpu.matmul %61, %62, %cst_60 {dimension_numbers = #tpu.dot_dimension_numbers<[1], [0], [0], [1], [0, 0, 1, 1], [], []>} : vector<24x64xf32>, vector<64x64xf32>, vector<24x64xf32> -> vector<24x64xf32>
    %64 = arith.addf %60, %63 : vector<24x64xf32>
    %c17_61 = arith.constant 17 : index
    %c0_62 = arith.constant 0 : index
    %65 = vector.load %arg16[%c17_61, %c0_62] : memref<56x64xf32, #tpu.memory_space<vmem>>, vector<24x64xf32>
    %c128 = arith.constant 128 : index
    %c0_63 = arith.constant 0 : index
    %66 = vector.load %arg7[%c128, %c0_63] : memref<192x64xf32, #tpu.memory_space<vmem>>, vector<64x64xf32>
    %cst_64 = arith.constant dense<0.000000e+00> : vector<24x64xf32>
    %67 = tpu.matmul %65, %66, %cst_64 {dimension_numbers = #tpu.dot_dimension_numbers<[1], [0], [0], [1], [0, 0, 1, 1], [], []>} : vector<24x64xf32>, vector<64x64xf32>, vector<24x64xf32> -> vector<24x64xf32>
    %68 = arith.addf %64, %67 : vector<24x64xf32>
    %c0_65 = arith.constant 0 : index
    %c0_66 = arith.constant 0 : index
    %69 = vector.load %arg8[%c0_65, %c0_66] : memref<1x64xf32, #tpu.memory_space<vmem>>, vector<1x64xf32>
    %70 = vector.broadcast %69 : vector<1x64xf32> to vector<24x64xf32>
    %71 = arith.addf %68, %70 : vector<24x64xf32>
    %cst_67 = arith.constant 0.000000e+00 : f32
    %72 = vector.broadcast %cst_67 : f32 to vector<24x64xf32>
    %73 = arith.maximumf %71, %72 : vector<24x64xf32>
    %c0_68 = arith.constant 0 : index
    %c0_69 = arith.constant 0 : index
    %74 = vector.load %arg17[%c0_68, %c0_69] : memref<24x64xf32, #tpu.memory_space<vmem>>, vector<24x64xf32>
    tpu.vector_store %arg17[%c0_68, %c0_69], %73 {strides = array<i32>} : memref<24x64xf32, #tpu.memory_space<vmem>>, vector<24x64xf32>,
    %c1 = arith.constant 1 : index
    %c0_70 = arith.constant 0 : index
    %75 = tpu.strided_load %arg17[%c1, %c0_70] {strides = array<i32: 12, 1>} : memref<24x64xf32, #tpu.memory_space<vmem>>, vector<2x64xf32>
    %c2 = arith.constant 2 : index
    %c0_71 = arith.constant 0 : index
    %76 = tpu.strided_load %arg17[%c2, %c0_71] {strides = array<i32: 12, 1>} : memref<24x64xf32, #tpu.memory_space<vmem>>, vector<2x64xf32>
    %77 = arith.addf %75, %76 : vector<2x64xf32>
    %c3 = arith.constant 3 : index
    %c0_72 = arith.constant 0 : index
    %78 = tpu.strided_load %arg17[%c3, %c0_72] {strides = array<i32: 12, 1>} : memref<24x64xf32, #tpu.memory_space<vmem>>, vector<2x64xf32>
    %79 = arith.addf %77, %78 : vector<2x64xf32>
    %c4 = arith.constant 4 : index
    %c0_73 = arith.constant 0 : index
    %80 = tpu.strided_load %arg17[%c4, %c0_73] {strides = array<i32: 12, 1>} : memref<24x64xf32, #tpu.memory_space<vmem>>, vector<2x64xf32>
    %81 = arith.addf %79, %80 : vector<2x64xf32>
    %c5 = arith.constant 5 : index
    %c0_74 = arith.constant 0 : index
    %82 = tpu.strided_load %arg17[%c5, %c0_74] {strides = array<i32: 12, 1>} : memref<24x64xf32, #tpu.memory_space<vmem>>, vector<2x64xf32>
    %83 = arith.addf %81, %82 : vector<2x64xf32>
    %c6 = arith.constant 6 : index
    %c0_75 = arith.constant 0 : index
    %84 = tpu.strided_load %arg17[%c6, %c0_75] {strides = array<i32: 12, 1>} : memref<24x64xf32, #tpu.memory_space<vmem>>, vector<2x64xf32>
    %85 = arith.addf %83, %84 : vector<2x64xf32>
    %c7 = arith.constant 7 : index
    %c0_76 = arith.constant 0 : index
    %86 = tpu.strided_load %arg17[%c7, %c0_76] {strides = array<i32: 12, 1>} : memref<24x64xf32, #tpu.memory_space<vmem>>, vector<2x64xf32>
    %87 = arith.addf %85, %86 : vector<2x64xf32>
    %c8 = arith.constant 8 : index
    %c0_77 = arith.constant 0 : index
    %88 = tpu.strided_load %arg17[%c8, %c0_77] {strides = array<i32: 12, 1>} : memref<24x64xf32, #tpu.memory_space<vmem>>, vector<2x64xf32>
    %89 = arith.addf %87, %88 : vector<2x64xf32>
    %cst_78 = arith.constant 1.250000e-01 : f32
    %90 = vector.broadcast %cst_78 : f32 to vector<2x64xf32>
    %91 = arith.mulf %89, %90 : vector<2x64xf32>
    %c0_79 = arith.constant 0 : index
    %c0_80 = arith.constant 0 : index
    %92 = vector.load %arg9[%c0_79, %c0_80] : memref<64x2xf32, #tpu.memory_space<vmem>>, vector<64x2xf32>
    %cst_81 = arith.constant dense<0.000000e+00> : vector<2x2xf32>
    %93 = tpu.matmul %91, %92, %cst_81 {dimension_numbers = #tpu.dot_dimension_numbers<[1], [0], [0], [1], [0, 0, 1, 1], [], []>} : vector<2x64xf32>, vector<64x2xf32>, vector<2x2xf32> -> vector<2x2xf32>
    %c0_82 = arith.constant 0 : index
    %c0_83 = arith.constant 0 : index
    %94 = vector.load %arg10[%c0_82, %c0_83] : memref<1x2xf32, #tpu.memory_space<vmem>>, vector<1x2xf32>
    %95 = vector.broadcast %94 : vector<1x2xf32> to vector<2x2xf32>
    %96 = arith.addf %93, %95 : vector<2x2xf32>
    %c0_84 = arith.constant 0 : index
    %c0_85 = arith.constant 0 : index
    %97 = vector.load %arg13[%c0_84, %c0_85] : memref<2x2xf32, #tpu.memory_space<vmem>>, vector<2x2xf32>
    tpu.vector_store %arg13[%c0_84, %c0_85], %96 {strides = array<i32>} : memref<2x2xf32, #tpu.memory_space<vmem>>, vector<2x2xf32>,
    return
  }
  func.func @transform_0(%arg0: i32) -> (i32, i32) {
    %c0_i32 = arith.constant 0 : i32
    %c0_i32_0 = arith.constant 0 : i32
    return %arg0, %c0_i32 : i32, i32
  }
  func.func @transform_1(%arg0: i32) -> (i32, i32) {
    %c0_i32 = arith.constant 0 : i32
    %c0_i32_0 = arith.constant 0 : i32
    %c0_i32_1 = arith.constant 0 : i32
    return %c0_i32, %c0_i32_0 : i32, i32
  }
  func.func @transform_2(%arg0: i32) -> (i32, i32) {
    %c0_i32 = arith.constant 0 : i32
    %c0_i32_0 = arith.constant 0 : i32
    %c0_i32_1 = arith.constant 0 : i32
    return %c0_i32, %c0_i32_0 : i32, i32
  }
  func.func @transform_3(%arg0: i32) -> (i32, i32) {
    %c0_i32 = arith.constant 0 : i32
    %c0_i32_0 = arith.constant 0 : i32
    %c0_i32_1 = arith.constant 0 : i32
    return %c0_i32, %c0_i32_0 : i32, i32
  }
  func.func @transform_4(%arg0: i32) -> (i32, i32) {
    %c0_i32 = arith.constant 0 : i32
    %c0_i32_0 = arith.constant 0 : i32
    %c0_i32_1 = arith.constant 0 : i32
    return %c0_i32, %c0_i32_0 : i32, i32
  }
  func.func @transform_5(%arg0: i32) -> (i32, i32) {
    %c0_i32 = arith.constant 0 : i32
    %c0_i32_0 = arith.constant 0 : i32
    %c0_i32_1 = arith.constant 0 : i32
    return %c0_i32, %c0_i32_0 : i32, i32
  }
  func.func @transform_6(%arg0: i32) -> (i32, i32) {
    %c0_i32 = arith.constant 0 : i32
    %c0_i32_0 = arith.constant 0 : i32
    %c0_i32_1 = arith.constant 0 : i32
    return %c0_i32, %c0_i32_0 : i32, i32
  }
  func.func @transform_7(%arg0: i32) -> (i32, i32) {
    %c0_i32 = arith.constant 0 : i32
    %c0_i32_0 = arith.constant 0 : i32
    %c0_i32_1 = arith.constant 0 : i32
    return %c0_i32, %c0_i32_0 : i32, i32
  }
  func.func @transform_8(%arg0: i32) -> (i32, i32) {
    %c0_i32 = arith.constant 0 : i32
    %c0_i32_0 = arith.constant 0 : i32
    %c0_i32_1 = arith.constant 0 : i32
    return %c0_i32, %c0_i32_0 : i32, i32
  }
  func.func @transform_9(%arg0: i32) -> (i32, i32) {
    %c0_i32 = arith.constant 0 : i32
    %c0_i32_0 = arith.constant 0 : i32
    %c0_i32_1 = arith.constant 0 : i32
    return %c0_i32, %c0_i32_0 : i32, i32
  }
  func.func @transform_10(%arg0: i32) -> (i32, i32) {
    %c0_i32 = arith.constant 0 : i32
    %c0_i32_0 = arith.constant 0 : i32
    %c0_i32_1 = arith.constant 0 : i32
    return %c0_i32, %c0_i32_0 : i32, i32
  }
  func.func @transform_11(%arg0: i32) -> (i32, i32) {
    %c0_i32 = arith.constant 0 : i32
    %c0_i32_0 = arith.constant 0 : i32
    %c0_i32_1 = arith.constant 0 : i32
    return %c0_i32, %c0_i32_0 : i32, i32
  }
  func.func @transform_12(%arg0: i32) -> (i32, i32) {
    %c0_i32 = arith.constant 0 : i32
    %c0_i32_0 = arith.constant 0 : i32
    return %arg0, %c0_i32 : i32, i32
  }
}

</mosaic_0001>

<llo_original>
// kernel: tpu_custom_call.1
$region0: #{tpu_custom_call.1}
  #allocation0 [shape = 'u32[]', space=smem, size = 0x4, offset = 0x4, fixed_abs, tag = 'smem constant byte address 0x4 - core index']
  #allocation1 [shape = 'u32[144,128]{1,0:T(1,128)}', space=vmem, size = 0x12000, scoped, tag = 'internal scratch']
  #allocation2 [shape = 'f32[48,32]{1,0:T(8,128)}', space=vmem, size = 0x6000, scoped, tag = 'scratch operand']
  #allocation3 [shape = 'f32[56,32]{1,0:T(8,128)}', space=vmem, size = 0x7000, scoped, tag = 'scratch operand']
  #allocation4 [shape = 'f32[56,64]{1,0:T(8,128)}', space=vmem, size = 0x7000, scoped, tag = 'scratch operand']
  #allocation5 [shape = 'f32[24,64]{1,0:T(8,128)}', space=vmem, size = 0x3000, scoped, tag = 'scratch operand']
  %s0 = inlined_call_operand.vmem [shape: f32[48,11], index: 0, kind: input, shape index: {}]
  %s1 = inlined_call_operand.vmem [shape: f32[11,16], index: 1, kind: input, shape index: {}]
  %s2 = inlined_call_operand.vmem [shape: f32[48,32], index: 2, kind: input, shape index: {}]
  %s3 = inlined_call_operand.vmem [shape: f32[1,32], index: 3, kind: input, shape index: {}]
  %s4 = inlined_call_operand.vmem [shape: f32[96,64], index: 4, kind: input, shape index: {}]
  %s5 = inlined_call_operand.vmem [shape: f32[1,64], index: 5, kind: input, shape index: {}]
  %s6 = inlined_call_operand.vmem [shape: f32[192,64], index: 6, kind: input, shape index: {}]
  %s7 = inlined_call_operand.vmem [shape: f32[1,64], index: 7, kind: input, shape index: {}]
  %s8 = inlined_call_operand.vmem [shape: f32[64,2], index: 8, kind: input, shape index: {}]
  %s9 = inlined_call_operand.vmem [shape: f32[1,2], index: 9, kind: input, shape index: {}]
  %s10 = inlined_call_operand.vmem [shape: f32[48,1], index: 10, kind: input, shape index: {}]
  %s11 = inlined_call_operand.vmem [shape: f32[24,1], index: 11, kind: input, shape index: {}]
  %s12 = inlined_call_operand.hbm [shape: f32[2,2], index: 12, kind: output, shape index: {}]
  %s13 = sld [smem:[#allocation0]]
  $region58: #{tpu_custom_call.1} parent=0
    _
  %s15 = ssub.s32 1, %s13
  %s16 = scalar_select 0, %s15, %s13
  $region1: #{tpu_custom_call.1} parent=0
    #allocation6 [shape = 'u8[1024]{0}', space=vmem, size = 0x400, scoped, tag = 'output window, operand 0, single buffered']
    #allocation7 [shape = 's32[1]{0}', space=sflag, size = 0x4, scoped, tag = 'scoped memory for tpu_custom_call.1']
    %17 = vsyncpa [#allocation7], 0
    // Predicated region
    $region2: #{tpu_custom_call.1} parent=1 // pred_check
      _
    $region3: #{tpu_custom_call.1} parent=1 // pred_check_branch
      %19 = sbr.rel (0) target = $region5
    $region4: #{tpu_custom_call.1} parent=1 // pred_region
      _
    $region5: #{tpu_custom_call.1} parent=1 // pred_fallthru
      _
    // Predicated region
    $region6: #{tpu_custom_call.1} parent=1 // pred_check
      _
    $region7: #{tpu_custom_call.1} parent=1 // pred_check_branch
      %21 = sbr.rel (0) target = $region9
    $region8: #{tpu_custom_call.1} parent=1 // pred_region
      _
    $region9: #{tpu_custom_call.1} parent=1 // pred_fallthru
      _
    // Predicated region
    $region10: #{tpu_custom_call.1} parent=1 // pred_check
      _
    $region11: #{tpu_custom_call.1} parent=1 // pred_check_branch
      %23 = sbr.rel (0) target = $region13
    $region12: #{tpu_custom_call.1} parent=1 // pred_region
      _
    $region13: #{tpu_custom_call.1} parent=1 // pred_fallthru
      _
    // Predicated region
    $region14: #{tpu_custom_call.1} parent=1 // pred_check
      _
    $region15: #{tpu_custom_call.1} parent=1 // pred_check_branch
      %25 = sbr.rel (0) target = $region17
    $region16: #{tpu_custom_call.1} parent=1 // pred_region
      _
    $region17: #{tpu_custom_call.1} parent=1 // pred_fallthru
      _
    // Predicated region
    $region18: #{tpu_custom_call.1} parent=1 // pred_check
      _
    $region19: #{tpu_custom_call.1} parent=1 // pred_check_branch
      %27 = sbr.rel (0) target = $region21
    $region20: #{tpu_custom_call.1} parent=1 // pred_region
      _
    $region21: #{tpu_custom_call.1} parent=1 // pred_fallthru
      _
    // Predicated region
    $region22: #{tpu_custom_call.1} parent=1 // pred_check
      _
    $region23: #{tpu_custom_call.1} parent=1 // pred_check_branch
      %29 = sbr.rel (0) target = $region25
    $region24: #{tpu_custom_call.1} parent=1 // pred_region
      _
    $region25: #{tpu_custom_call.1} parent=1 // pred_fallthru
      _
    // Predicated region
    $region26: #{tpu_custom_call.1} parent=1 // pred_check
      _
    $region27: #{tpu_custom_call.1} parent=1 // pred_check_branch
      %31 = sbr.rel (0) target = $region29
    $region28: #{tpu_custom_call.1} parent=1 // pred_region
      _
    $region29: #{tpu_custom_call.1} parent=1 // pred_fallthru
      _
    // Predicated region
    $region30: #{tpu_custom_call.1} parent=1 // pred_check
      _
    $region31: #{tpu_custom_call.1} parent=1 // pred_check_branch
      %33 = sbr.rel (0) target = $region33
    $region32: #{tpu_custom_call.1} parent=1 // pred_region
      _
    $region33: #{tpu_custom_call.1} parent=1 // pred_fallthru
      _
    // Predicated region
    $region34: #{tpu_custom_call.1} parent=1 // pred_check
      _
    $region35: #{tpu_custom_call.1} parent=1 // pred_check_branch
      %35 = sbr.rel (0) target = $region37
    $region36: #{tpu_custom_call.1} parent=1 // pred_region
      _
    $region37: #{tpu_custom_call.1} parent=1 // pred_fallthru
      _
    // Predicated region
    $region38: #{tpu_custom_call.1} parent=1 // pred_check
      _
    $region39: #{tpu_custom_call.1} parent=1 // pred_check_branch
      %37 = sbr.rel (0) target = $region41
    $region40: #{tpu_custom_call.1} parent=1 // pred_region
      _
    $region41: #{tpu_custom_call.1} parent=1 // pred_fallthru
      _
    // Predicated region
    $region42: #{tpu_custom_call.1} parent=1 // pred_check
      _
    $region43: #{tpu_custom_call.1} parent=1 // pred_check_branch
      %39 = sbr.rel (0) target = $region45
    $region44: #{tpu_custom_call.1} parent=1 // pred_region
      _
    $region45: #{tpu_custom_call.1} parent=1 // pred_fallthru
      _
    // Predicated region
    $region46: #{tpu_custom_call.1} parent=1 // pred_check
      _
    $region47: #{tpu_custom_call.1} parent=1 // pred_check_branch
      %41 = sbr.rel (0) target = $region49
    $region48: #{tpu_custom_call.1} parent=1 // pred_region
      _
    $region49: #{tpu_custom_call.1} parent=1 // pred_fallthru
      _
    %v42 = vld [vmem:[%s0] sm:$0xff]
    %v43 = vld [vmem:[%s0 + $0x8] sm:$0xff]
    %v44 = vld [vmem:[%s0 + $0x10] sm:$0xff]
    %v45 = vld [vmem:[%s0 + $0x18] sm:$0xff]
    %v46 = vld [vmem:[%s0 + $0x20] sm:$0xff]
    %v47 = vld [vmem:[%s0 + $0x28] sm:$0xff]
    %v48 = vld [vmem:[%s1] sm:$0xff]
    %v49 = vld [vmem:[%s1 + $0x8] sm:$0x7]
    %vm50 = vcmask 89088
    %v52 = vsel %vm50, %v42, 0
    %v55 = vsel %vm50, %v43, 0
    %v58 = vsel %vm50, %v44, 0
    %v61 = vsel %vm50, %v45, 0
    %v64 = vsel %vm50, %v46, 0
    %v67 = vsel %vm50, %v47, 0
    %vm69 = vcmask 1042432
    %v71 = vsel %vm69, %v49, 0
    %73 = vmatprep.subr.mxu0 0.0
    %74 = vmatpush1.msra.mxu0 %v48
    %75 = vmatprep.subr.mxu0 0.0
    %76 = vmatpush1.msra.mxu0 %v71
    %77 = vmatprep.subr.mxu0 0.0
    %78 = vmatpush1.msra.mxu0 0.0
    %79 = vmatprep.subr.mxu0 0.0
    %80 = vmatpush1.msra.mxu0 0.0
    %81 = vmatprep.subr.mxu0 0.0
    %82 = vmatpush1.msra.mxu0 0.0
    %83 = vmatprep.subr.mxu0 0.0
    %84 = vmatpush1.msra.mxu0 0.0
    %85 = vmatprep.subr.mxu0 0.0
    %86 = vmatpush1.msra.mxu0 0.0
    %87 = vmatprep.subr.mxu0 0.0
    %88 = vmatpush1.msra.mxu0 0.0
    %89 = vmatprep.subr.mxu0 0.0
    %90 = vmatpush1.msra.mxu0 0.0
    %91 = vmatprep.subr.mxu0 0.0
    %92 = vmatpush1.msra.mxu0 0.0
    %93 = vmatprep.subr.mxu0 0.0
    %94 = vmatpush1.msra.mxu0 0.0
    %95 = vmatprep.subr.mxu0 0.0
    %96 = vmatpush1.msra.mxu0 0.0
    %97 = vmatprep.subr.mxu0 0.0
    %98 = vmatpush1.msra.mxu0 0.0
    %99 = vmatprep.subr.mxu0 0.0
    %100 = vmatpush1.msra.mxu0 0.0
    %101 = vmatprep.subr.mxu0 0.0
    %102 = vmatpush1.msra.mxu0 0.0
    %103 = vmatprep.subr.mxu0 0.0
    %104 = vmatpush1.msra.mxu0 0.0
    %105 = vmatprep.subr.mxu0 0.0
    %106 = vmatpush1.msra.mxu0 0.0
    %107 = vmatprep.subr.mxu0 0.0
    %108 = vmatpush1.msra.mxu0 0.0
    %109 = vmatprep.subr.mxu0 0.0
    %110 = vmatpush1.msra.mxu0 0.0
    %111 = vmatprep.subr.mxu0 0.0
    %112 = vmatpush1.msra.mxu0 0.0
    %113 = vmatprep.subr.mxu0 0.0
    %114 = vmatpush1.msra.mxu0 0.0
    %115 = vmatprep.subr.mxu0 0.0
    %116 = vmatpush1.msra.mxu0 0.0
    %117 = vmatprep.subr.mxu0 0.0
    %118 = vmatpush1.msra.mxu0 0.0
    %119 = vmatprep.subr.mxu0 0.0
    %120 = vmatpush1.msra.mxu0 0.0
    %121 = vmatprep.subr.mxu0 0.0
    %122 = vmatpush1.msra.mxu0 0.0
    %123 = vmatprep.subr.mxu0 0.0
    %124 = vmatpush1.msra.mxu0 0.0
    %125 = vmatprep.subr.mxu0 0.0
    %126 = vmatpush1.msra.mxu0 0.0
    %127 = vmatprep.subr.mxu0 0.0
    %128 = vmatpush1.msra.mxu0 0.0
    %129 = vmatprep.subr.mxu0 0.0
    %130 = vmatpush1.msra.mxu0 0.0
    %131 = vmatprep.subr.mxu0 0.0
    %132 = vmatpush1.msra.mxu0 0.0
    %133 = vmatprep.subr.mxu0 0.0
    %134 = vmatpush1.msra.mxu0 0.0
    %135 = vmatprep.subr.mxu0 0.0
    %136 = vmatpush1.msra.mxu0 0.0
    %137 = vmatprep.mubr.f32.mxu0 0.0
    %138 = vmatmul.mubr.f32.gmra.mrb[0].mxu0 %v52
    %v139 = vpop.f32.mrb[0].mxu0
    %v140 = vadd.f32 0.0, %v139
    %v141 = vpop.f32.mrb[0].mxu0
    %142 = vmatprep.mubr.f32.mxu0 0.0
    %143 = vmatmul.mubr.f32.gmra.mrb[0].mxu0 %v55
    %v144 = vpop.f32.mrb[0].mxu0
    %v145 = vadd.f32 0.0, %v144
    %v146 = vpop.f32.mrb[0].mxu0
    %147 = vmatprep.mubr.f32.mxu0 0.0
    %148 = vmatmul.mubr.f32.gmra.mrb[0].mxu0 %v58
    %v149 = vpop.f32.mrb[0].mxu0
    %v150 = vadd.f32 0.0, %v149
    %v151 = vpop.f32.mrb[0].mxu0
    %152 = vmatprep.mubr.f32.mxu0 0.0
    %153 = vmatmul.mubr.f32.gmra.mrb[0].mxu0 %v61
    %v154 = vpop.f32.mrb[0].mxu0
    %v155 = vadd.f32 0.0, %v154
    %v156 = vpop.f32.mrb[0].mxu0
    %157 = vmatprep.mubr.f32.mxu0 0.0
    %158 = vmatmul.mubr.f32.gmra.mrb[0].mxu0 %v64
    %v159 = vpop.f32.mrb[0].mxu0
    %v160 = vadd.f32 0.0, %v159
    %v161 = vpop.f32.mrb[0].mxu0
    %162 = vmatprep.mubr.f32.mxu0 0.0
    %163 = vmatmul.mubr.f32.gmra.mrb[0].mxu0 %v67
    %v164 = vpop.f32.mrb[0].mxu0
    %v165 = vadd.f32 0.0, %v164
    %v166 = vpop.f32.mrb[0].mxu0
    %167 = vdwg.mxu0
    %v168 = vmax.f32 %v140, 0.0
    %v169 = vmax.f32 %v145, 0.0
    %v170 = vmax.f32 %v150, 0.0
    %v171 = vmax.f32 %v155, 0.0
    %v172 = vmax.f32 %v160, 0.0
    %v173 = vmax.f32 %v165, 0.0
    %v174 = vld [vmem:[%s10] sm:$0xff]
    %v175 = vld [vmem:[%s10 + $0x8] sm:$0xff]
    %v176 = vld [vmem:[%s10 + $0x10] sm:$0xff]
    %v177 = vld [vmem:[%s10 + $0x18] sm:$0xff]
    %v178 = vld [vmem:[%s10 + $0x20] sm:$0xff]
    %v179 = vld [vmem:[%s10 + $0x28] sm:$0xff]
    %181 = vset.pattern.permute.xlu0 0
    %182 = vperm.xlu0 %181, %v174
    %v183 = vpop.permute.xlu0 %182
    %186 = vset.pattern.permute.xlu0 0
    %187 = vperm.xlu0 %186, %v175
    %v188 = vpop.permute.xlu0 %187
    %191 = vset.pattern.permute.xlu0 0
    %192 = vperm.xlu0 %191, %v176
    %v193 = vpop.permute.xlu0 %192
    %196 = vset.pattern.permute.xlu0 0
    %197 = vperm.xlu0 %196, %v177
    %v198 = vpop.permute.xlu0 %197
    %201 = vset.pattern.permute.xlu0 0
    %202 = vperm.xlu0 %201, %v178
    %v203 = vpop.permute.xlu0 %202
    %206 = vset.pattern.permute.xlu0 0
    %207 = vperm.xlu0 %206, %v179
    %v208 = vpop.permute.xlu0 %207
    %v210 = vmul.f32 %v168, %v183
    %v211 = vmul.f32 %v169, %v188
    %v212 = vmul.f32 %v170, %v193
    %v213 = vmul.f32 %v171, %v198
    %v214 = vmul.f32 %v172, %v203
    %v215 = vmul.f32 %v173, %v208
    %v216 = vrot.slane %v210, 7
    %v217 = vrot.slane %v211, 7
    %v218 = vrot.slane %v212, 7
    %v219 = vrot.slane %v213, 7
    %v220 = vrot.slane %v214, 7
    %v221 = vrot.slane %v215, 7
    %v222 = vlaneseq
    %v223 = vshrl.u32 %v222, 7
    %vm224 = vcmp.lt.s32.totalorder %v223, 1
    %v225 = vsel %vm224, %v220, %v221
    %v226 = vsel %vm224, %v219, %v220
    %v227 = vsel %vm224, %v218, %v219
    %v228 = vsel %vm224, %v217, %v218
    %v229 = vsel %vm224, %v216, %v217
    %v230 = vsel %vm224, %v221, %v216
    %v231 = vrot.slane %v210, 1
    %v232 = vrot.slane %v211, 1
    %v233 = vrot.slane %v212, 1
    %v234 = vrot.slane %v213, 1
    %v235 = vrot.slane %v214, 1
    %v236 = vrot.slane %v215, 1
    %vm237 = vcmp.lt.s32.totalorder %v223, 7
    %v238 = vsel %vm237, %v235, %v236
    %v239 = vsel %vm237, %v234, %v235
    %v240 = vsel %vm237, %v233, %v234
    %v241 = vsel %vm237, %v232, %v233
    %v242 = vsel %vm237, %v231, %v232
    %v243 = vsel %vm237, %v236, %v231
    %250 = vrot.lane.b32.xlu0 %v210, 16
    %v251 = vpop.permute.xlu0 %250
    %252 = vrot.lane.b32.xlu0 %v211, 16
    %v253 = vpop.permute.xlu0 %252
    %254 = vrot.lane.b32.xlu0 %v212, 16
    %v255 = vpop.permute.xlu0 %254
    %256 = vrot.lane.b32.xlu0 %v213, 16
    %v257 = vpop.permute.xlu0 %256
    %258 = vrot.lane.b32.xlu0 %v214, 16
    %v259 = vpop.permute.xlu0 %258
    %260 = vrot.lane.b32.xlu0 %v215, 16
    %v261 = vpop.permute.xlu0 %260
    %274 = vrot.lane.b32.xlu0 %v242, 32
    %v275 = vpop.permute.xlu0 %274
    %276 = vrot.lane.b32.xlu0 %v241, 32
    %v277 = vpop.permute.xlu0 %276
    %278 = vrot.lane.b32.xlu0 %v240, 32
    %v279 = vpop.permute.xlu0 %278
    %280 = vrot.lane.b32.xlu0 %v239, 32
    %v281 = vpop.permute.xlu0 %280
    %282 = vrot.lane.b32.xlu0 %v238, 32
    %v283 = vpop.permute.xlu0 %282
    %284 = vrot.lane.b32.xlu0 %v243, 32
    %v285 = vpop.permute.xlu0 %284
    %vm292 = vcmask 130048
    %v293 = vsel %vm292, %v230, %v251
    %v294 = vsel %vm292, %v229, %v253
    %v295 = vsel %vm292, %v228, %v255
    %v296 = vsel %vm292, %v227, %v257
    %v297 = vsel %vm292, %v226, %v259
    %v298 = vsel %vm292, %v225, %v261
    %vm299 = vcmask 261120
    %v300 = vsel %vm299, %v293, %v275
    %v301 = vsel %vm299, %v294, %v277
    %v302 = vsel %vm299, %v295, %v279
    %v303 = vsel %vm299, %v296, %v281
    %v304 = vsel %vm299, %v297, %v283
    %v305 = vsel %vm299, %v298, %v285
    %v306 = vld [vmem:[%s2] sm:$0xff]
    %v307 = vld [vmem:[%s2 + $0x8] sm:$0xff]
    %v308 = vld [vmem:[%s2 + $0x10] sm:$0xff]
    %v309 = vld [vmem:[%s2 + $0x18] sm:$0xff]
    %v310 = vld [vmem:[%s2 + $0x20] sm:$0xff]
    %v311 = vld [vmem:[%s2 + $0x28] sm:$0xff]
    %v312 = vld [vmem:[%s3] sm:$0x1]
    %v314 = vlaneseq
    %v315 = vshrl.u32 %v314, 7
    %v316 = vsub.s32 0, %v315
    %v317 = vrot.slane %v312, %v316
    %vm319 = vcmask 392192
    %v321 = vsel %vm319, %v300, 0
    %v324 = vsel %vm319, %v301, 0
    %v327 = vsel %vm319, %v302, 0
    %v330 = vsel %vm319, %v303, 0
    %v333 = vsel %vm319, %v304, 0
    %v336 = vsel %vm319, %v305, 0
    %338 = vmatprep.subr.mxu0 0.0
    %339 = vmatpush1.msra.mxu0 %v306
    %340 = vmatprep.subr.mxu0 0.0
    %341 = vmatpush1.msra.mxu0 %v307
    %342 = vmatprep.subr.mxu0 0.0
    %343 = vmatpush1.msra.mxu0 %v308
    %344 = vmatprep.subr.mxu0 0.0
    %345 = vmatpush1.msra.mxu0 %v309
    %346 = vmatprep.subr.mxu0 0.0
    %347 = vmatpush1.msra.mxu0 %v310
    %348 = vmatprep.subr.mxu0 0.0
    %349 = vmatpush1.msra.mxu0 %v311
    %350 = vmatprep.subr.mxu0 0.0
    %351 = vmatpush1.msra.mxu0 0.0
    %352 = vmatprep.subr.mxu0 0.0
    %353 = vmatpush1.msra.mxu0 0.0
    %354 = vmatprep.subr.mxu0 0.0
    %355 = vmatpush1.msra.mxu0 0.0
    %356 = vmatprep.subr.mxu0 0.0
    %357 = vmatpush1.msra.mxu0 0.0
    %358 = vmatprep.subr.mxu0 0.0
    %359 = vmatpush1.msra.mxu0 0.0
    %360 = vmatprep.subr.mxu0 0.0
    %361 = vmatpush1.msra.mxu0 0.0
    %362 = vmatprep.subr.mxu0 0.0
    %363 = vmatpush1.msra.mxu0 0.0
    %364 = vmatprep.subr.mxu0 0.0
    %365 = vmatpush1.msra.mxu0 0.0
    %366 = vmatprep.subr.mxu0 0.0
    %367 = vmatpush1.msra.mxu0 0.0
    %368 = vmatprep.subr.mxu0 0.0
    %369 = vmatpush1.msra.mxu0 0.0
    %370 = vmatprep.subr.mxu0 0.0
    %371 = vmatpush1.msra.mxu0 0.0
    %372 = vmatprep.subr.mxu0 0.0
    %373 = vmatpush1.msra.mxu0 0.0
    %374 = vmatprep.subr.mxu0 0.0
    %375 = vmatpush1.msra.mxu0 0.0
    %376 = vmatprep.subr.mxu0 0.0
    %377 = vmatpush1.msra.mxu0 0.0
    %378 = vmatprep.subr.mxu0 0.0
    %379 = vmatpush1.msra.mxu0 0.0
    %380 = vmatprep.subr.mxu0 0.0
    %381 = vmatpush1.msra.mxu0 0.0
    %382 = vmatprep.subr.mxu0 0.0
    %383 = vmatpush1.msra.mxu0 0.0
    %384 = vmatprep.subr.mxu0 0.0
    %385 = vmatpush1.msra.mxu0 0.0
    %386 = vmatprep.subr.mxu0 0.0
    %387 = vmatpush1.msra.mxu0 0.0
    %388 = vmatprep.subr.mxu0 0.0
    %389 = vmatpush1.msra.mxu0 0.0
    %390 = vmatprep.subr.mxu0 0.0
    %391 = vmatpush1.msra.mxu0 0.0
    %392 = vmatprep.subr.mxu0 0.0
    %393 = vmatpush1.msra.mxu0 0.0
    %394 = vmatprep.subr.mxu0 0.0
    %395 = vmatpush1.msra.mxu0 0.0
    %396 = vmatprep.subr.mxu0 0.0
    %397 = vmatpush1.msra.mxu0 0.0
    %398 = vmatprep.subr.mxu0 0.0
    %399 = vmatpush1.msra.mxu0 0.0
    %400 = vmatprep.subr.mxu0 0.0
    %401 = vmatpush1.msra.mxu0 0.0
    %402 = vmatprep.mubr.f32.mxu0 0.0
    %403 = vmatmul.mubr.f32.gmra.mrb[0].mxu0 %v321
    %v404 = vpop.f32.mrb[0].mxu0
    %v405 = vadd.f32 %v317, %v404
    %v406 = vpop.f32.mrb[0].mxu0
    %407 = vmatprep.mubr.f32.mxu0 0.0
    %408 = vmatmul.mubr.f32.gmra.mrb[0].mxu0 %v324
    %v409 = vpop.f32.mrb[0].mxu0
    %v410 = vadd.f32 %v317, %v409
    %v411 = vpop.f32.mrb[0].mxu0
    %412 = vmatprep.mubr.f32.mxu0 0.0
    %413 = vmatmul.mubr.f32.gmra.mrb[0].mxu0 %v327
    %v414 = vpop.f32.mrb[0].mxu0
    %v415 = vadd.f32 %v317, %v414
    %v416 = vpop.f32.mrb[0].mxu0
    %417 = vmatprep.mubr.f32.mxu0 0.0
    %418 = vmatmul.mubr.f32.gmra.mrb[0].mxu0 %v330
    %v419 = vpop.f32.mrb[0].mxu0
    %v420 = vadd.f32 %v317, %v419
    %v421 = vpop.f32.mrb[0].mxu0
    %422 = vmatprep.mubr.f32.mxu0 0.0
    %423 = vmatmul.mubr.f32.gmra.mrb[0].mxu0 %v333
    %v424 = vpop.f32.mrb[0].mxu0
    %v425 = vadd.f32 %v317, %v424
    %v426 = vpop.f32.mrb[0].mxu0
    %427 = vmatprep.mubr.f32.mxu0 0.0
    %428 = vmatmul.mubr.f32.gmra.mrb[0].mxu0 %v336
    %v429 = vpop.f32.mrb[0].mxu0
    %v430 = vadd.f32 %v317, %v429
    %v431 = vpop.f32.mrb[0].mxu0
    %432 = vdwg.mxu0
    %v433 = vmax.f32 %v405, 0.0
    %v434 = vmax.f32 %v410, 0.0
    %v435 = vmax.f32 %v415, 0.0
    %v436 = vmax.f32 %v420, 0.0
    %v437 = vmax.f32 %v425, 0.0
    %v438 = vmax.f32 %v430, 0.0
    %v439 = vrot.slane %v433, 1
    %v440 = vrot.slane %v434, 1
    %v441 = vrot.slane %v435, 1
    %v442 = vrot.slane %v436, 1
    %v443 = vrot.slane %v437, 1
    %v444 = vrot.slane %v438, 1
    %v445 = vsel %vm237, %v443, %v444
    %v446 = vsel %vm237, %v442, %v443
    %v447 = vsel %vm237, %v441, %v442
    %v448 = vsel %vm237, %v440, %v441
    %v449 = vsel %vm237, %v439, %v440
    %v450 = vsel %vm237, %v444, %v439
    %v451 = vmax.f32 %v433, %v449
    %v452 = vmax.f32 %v434, %v448
    %v453 = vmax.f32 %v435, %v447
    %v454 = vmax.f32 %v436, %v446
    %v455 = vmax.f32 %v437, %v445
    %v456 = vmax.f32 %v438, %v450
    %457 = vst.msk [vmem:[#allocation2] sm:$0xff] %vm299, %v451
    %458 = vst.msk [vmem:[#allocation2 + $0x8] sm:$0xff] %vm299, %v452
    %459 = vst.msk [vmem:[#allocation2 + $0x10] sm:$0xff] %vm299, %v453
    %460 = vst.msk [vmem:[#allocation2 + $0x18] sm:$0xff] %vm299, %v454
    %461 = vst.msk [vmem:[#allocation2 + $0x20] sm:$0xff] %vm299, %v455
    %462 = vst.msk [vmem:[#allocation2 + $0x28] sm:$0xff] %vm299, %v456
    %v463 = vld [vmem:[#allocation2] ss:$2 sm:$0xff]
    %s464 = scalar_lea.vmem [#allocation2], 16
    %v465 = vld [vmem:[%s464] ss:$2 sm:$0xff]
    %s466 = scalar_lea.vmem [#allocation2], 32
    %v467 = vld [vmem:[%s466] ss:$2 sm:$0xff]
    %v468 = vld [vmem:[%s11] sm:$0xff]
    %v469 = vld [vmem:[%s11 + $0x8] sm:$0xff]
    %v470 = vld [vmem:[%s11 + $0x10] sm:$0xff]
    %472 = vset.pattern.permute.xlu0 0
    %473 = vperm.xlu0 %472, %v468
    %v474 = vpop.permute.xlu0 %473
    %477 = vset.pattern.permute.xlu0 0
    %478 = vperm.xlu0 %477, %v469
    %v479 = vpop.permute.xlu0 %478
    %482 = vset.pattern.permute.xlu0 0
    %483 = vperm.xlu0 %482, %v470
    %v484 = vpop.permute.xlu0 %483
    %v486 = vmul.f32 %v463, %v474
    %v487 = vmul.f32 %v465, %v479
    %v488 = vmul.f32 %v467, %v484
    %489 = vst.msk [vmem:[#allocation3] sm:$0xff] %vm299, 0.0
    %490 = vst.msk [vmem:[#allocation3 + $0x8] sm:$0xff] %vm299, 0.0
    %491 = vst.msk [vmem:[#allocation3 + $0x28] sm:$0xff] %vm299, 0.0
    %492 = vst.msk [vmem:[#allocation3 + $0x30] sm:$0xff] %vm299, 0.0
    %493 = vst.msk [vmem:[#allocation3 + $0x10] sm:$0xff] %vm299, %v486
    %494 = vst.msk [vmem:[#allocation3 + $0x18] sm:$0xff] %vm299, %v487
    %495 = vst.msk [vmem:[#allocation3 + $0x20] sm:$0xff] %vm299, %v488
    %v496 = vld [vmem:[#allocation3 + $0xf] sm:$0xff]
    %v497 = vld [vmem:[#allocation3 + $0x17] sm:$0xff]
    %v498 = vld [vmem:[#allocation3 + $0x1f] sm:$0xff]
    %v499 = vld [vmem:[%s4] sm:$0xff]
    %v500 = vld [vmem:[%s4 + $0x8] sm:$0xff]
    %v501 = vld [vmem:[%s4 + $0x10] sm:$0xff]
    %v502 = vld [vmem:[%s4 + $0x18] sm:$0xff]
    %v503 = vld [vmem:[#allocation3 + $0x10] sm:$0xff]
    %v504 = vld [vmem:[#allocation3 + $0x18] sm:$0xff]
    %v505 = vld [vmem:[#allocation3 + $0x20] sm:$0xff]
    %v506 = vld [vmem:[%s4 + $0x20] sm:$0xff]
    %v507 = vld [vmem:[%s4 + $0x28] sm:$0xff]
    %v508 = vld [vmem:[%s4 + $0x30] sm:$0xff]
    %v509 = vld [vmem:[%s4 + $0x38] sm:$0xff]
    %v511 = vsel %vm299, %v503, 0
    %v514 = vsel %vm299, %v504, 0
    %v517 = vsel %vm299, %v505, 0
    %519 = vmatprep.subr.mxu0 0.0
    %520 = vmatpush1.msra.mxu0 %v506
    %521 = vmatprep.subr.mxu0 0.0
    %522 = vmatpush1.msra.mxu0 %v507
    %523 = vmatprep.subr.mxu0 0.0
    %524 = vmatpush1.msra.mxu0 %v508
    %525 = vmatprep.subr.mxu0 0.0
    %526 = vmatpush1.msra.mxu0 %v509
    %527 = vmatprep.subr.mxu0 0.0
    %528 = vmatpush1.msra.mxu0 0.0
    %529 = vmatprep.subr.mxu0 0.0
    %530 = vmatpush1.msra.mxu0 0.0
    %531 = vmatprep.subr.mxu0 0.0
    %532 = vmatpush1.msra.mxu0 0.0
    %533 = vmatprep.subr.mxu0 0.0
    %534 = vmatpush1.msra.mxu0 0.0
    %535 = vmatprep.subr.mxu0 0.0
    %536 = vmatpush1.msra.mxu0 0.0
    %537 = vmatprep.subr.mxu0 0.0
    %538 = vmatpush1.msra.mxu0 0.0
    %539 = vmatprep.subr.mxu0 0.0
    %540 = vmatpush1.msra.mxu0 0.0
    %541 = vmatprep.subr.mxu0 0.0
    %542 = vmatpush1.msra.mxu0 0.0
    %543 = vmatprep.subr.mxu0 0.0
    %544 = vmatpush1.msra.mxu0 0.0
    %545 = vmatprep.subr.mxu0 0.0
    %546 = vmatpush1.msra.mxu0 0.0
    %547 = vmatprep.subr.mxu0 0.0
    %548 = vmatpush1.msra.mxu0 0.0
    %549 = vmatprep.subr.mxu0 0.0
    %550 = vmatpush1.msra.mxu0 0.0
    %551 = vmatprep.subr.mxu0 0.0
    %552 = vmatpush1.msra.mxu0 0.0
    %553 = vmatprep.subr.mxu0 0.0
    %554 = vmatpush1.msra.mxu0 0.0
    %555 = vmatprep.subr.mxu0 0.0
    %556 = vmatpush1.msra.mxu0 0.0
    %557 = vmatprep.subr.mxu0 0.0
    %558 = vmatpush1.msra.mxu0 0.0
    %559 = vmatprep.subr.mxu0 0.0
    %560 = vmatpush1.msra.mxu0 0.0
    %561 = vmatprep.subr.mxu0 0.0
    %562 = vmatpush1.msra.mxu0 0.0
    %563 = vmatprep.subr.mxu0 0.0
    %564 = vmatpush1.msra.mxu0 0.0
    %565 = vmatprep.subr.mxu0 0.0
    %566 = vmatpush1.msra.mxu0 0.0
    %567 = vmatprep.subr.mxu0 0.0
    %568 = vmatpush1.msra.mxu0 0.0
    %569 = vmatprep.subr.mxu0 0.0
    %570 = vmatpush1.msra.mxu0 0.0
    %571 = vmatprep.subr.mxu0 0.0
    %572 = vmatpush1.msra.mxu0 0.0
    %573 = vmatprep.subr.mxu0 0.0
    %574 = vmatpush1.msra.mxu0 0.0
    %575 = vmatprep.subr.mxu0 0.0
    %576 = vmatpush1.msra.mxu0 0.0
    %577 = vmatprep.subr.mxu0 0.0
    %578 = vmatpush1.msra.mxu0 0.0
    %579 = vmatprep.subr.mxu0 0.0
    %580 = vmatpush1.msra.mxu0 0.0
    %581 = vmatprep.subr.mxu0 0.0
    %582 = vmatpush1.msra.mxu0 0.0
    %583 = vmatprep.mubr.f32.mxu0 0.0
    %584 = vmatmul.mubr.f32.gmra.mrb[0].mxu0 %v511
    %v585 = vpop.f32.mrb[0].mxu0
    %v586 = vadd.f32 0.0, %v585
    %v587 = vpop.f32.mrb[0].mxu0
    %588 = vmatprep.mubr.f32.mxu0 0.0
    %589 = vmatmul.mubr.f32.gmra.mrb[0].mxu0 %v514
    %v590 = vpop.f32.mrb[0].mxu0
    %v591 = vadd.f32 0.0, %v590
    %v592 = vpop.f32.mrb[0].mxu0
    %593 = vmatprep.mubr.f32.mxu0 0.0
    %594 = vmatmul.mubr.f32.gmra.mrb[0].mxu0 %v517
    %v595 = vpop.f32.mrb[0].mxu0
    %v596 = vadd.f32 0.0, %v595
    %v597 = vpop.f32.mrb[0].mxu0
    %598 = vdwg.mxu0
    %v600 = vsel %vm299, %v496, 0
    %v603 = vsel %vm299, %v497, 0
    %v606 = vsel %vm299, %v498, 0
    %608 = vmatprep.subr.mxu0 0.0
    %609 = vmatpush1.msra.mxu0 %v499
    %610 = vmatprep.subr.mxu0 0.0
    %611 = vmatpush1.msra.mxu0 %v500
    %612 = vmatprep.subr.mxu0 0.0
    %613 = vmatpush1.msra.mxu0 %v501
    %614 = vmatprep.subr.mxu0 0.0
    %615 = vmatpush1.msra.mxu0 %v502
    %616 = vmatprep.subr.mxu0 0.0
    %617 = vmatpush1.msra.mxu0 0.0
    %618 = vmatprep.subr.mxu0 0.0
    %619 = vmatpush1.msra.mxu0 0.0
    %620 = vmatprep.subr.mxu0 0.0
    %621 = vmatpush1.msra.mxu0 0.0
    %622 = vmatprep.subr.mxu0 0.0
    %623 = vmatpush1.msra.mxu0 0.0
    %624 = vmatprep.subr.mxu0 0.0
    %625 = vmatpush1.msra.mxu0 0.0
    %626 = vmatprep.subr.mxu0 0.0
    %627 = vmatpush1.msra.mxu0 0.0
    %628 = vmatprep.subr.mxu0 0.0
    %629 = vmatpush1.msra.mxu0 0.0
    %630 = vmatprep.subr.mxu0 0.0
    %631 = vmatpush1.msra.mxu0 0.0
    %632 = vmatprep.subr.mxu0 0.0
    %633 = vmatpush1.msra.mxu0 0.0
    %634 = vmatprep.subr.mxu0 0.0
    %635 = vmatpush1.msra.mxu0 0.0
    %636 = vmatprep.subr.mxu0 0.0
    %637 = vmatpush1.msra.mxu0 0.0
    %638 = vmatprep.subr.mxu0 0.0
    %639 = vmatpush1.msra.mxu0 0.0
    %640 = vmatprep.subr.mxu0 0.0
    %641 = vmatpush1.msra.mxu0 0.0
    %642 = vmatprep.subr.mxu0 0.0
    %643 = vmatpush1.msra.mxu0 0.0
    %644 = vmatprep.subr.mxu0 0.0
    %645 = vmatpush1.msra.mxu0 0.0
    %646 = vmatprep.subr.mxu0 0.0
    %647 = vmatpush1.msra.mxu0 0.0
    %648 = vmatprep.subr.mxu0 0.0
    %649 = vmatpush1.msra.mxu0 0.0
    %650 = vmatprep.subr.mxu0 0.0
    %651 = vmatpush1.msra.mxu0 0.0
    %652 = vmatprep.subr.mxu0 0.0
    %653 = vmatpush1.msra.mxu0 0.0
    %654 = vmatprep.subr.mxu0 0.0
    %655 = vmatpush1.msra.mxu0 0.0
    %656 = vmatprep.subr.mxu0 0.0
    %657 = vmatpush1.msra.mxu0 0.0
    %658 = vmatprep.subr.mxu0 0.0
    %659 = vmatpush1.msra.mxu0 0.0
    %660 = vmatprep.subr.mxu0 0.0
    %661 = vmatpush1.msra.mxu0 0.0
    %662 = vmatprep.subr.mxu0 0.0
    %663 = vmatpush1.msra.mxu0 0.0
    %664 = vmatprep.subr.mxu0 0.0
    %665 = vmatpush1.msra.mxu0 0.0
    %666 = vmatprep.subr.mxu0 0.0
    %667 = vmatpush1.msra.mxu0 0.0
    %668 = vmatprep.subr.mxu0 0.0
    %669 = vmatpush1.msra.mxu0 0.0
    %670 = vmatprep.subr.mxu0 0.0
    %671 = vmatpush1.msra.mxu0 0.0
    %672 = vmatprep.mubr.f32.mxu0 0.0
    %673 = vmatmul.mubr.f32.gmra.mrb[0].mxu0 %v600
    %v674 = vpop.f32.mrb[0].mxu0
    %v675 = vadd.f32 %v586, %v674
    %v676 = vpop.f32.mrb[0].mxu0
    %677 = vmatprep.mubr.f32.mxu0 0.0
    %678 = vmatmul.mubr.f32.gmra.mrb[0].mxu0 %v603
    %v679 = vpop.f32.mrb[0].mxu0
    %v680 = vadd.f32 %v591, %v679
    %v681 = vpop.f32.mrb[0].mxu0
    %682 = vmatprep.mubr.f32.mxu0 0.0
    %683 = vmatmul.mubr.f32.gmra.mrb[0].mxu0 %v606
    %v684 = vpop.f32.mrb[0].mxu0
    %v685 = vadd.f32 %v596, %v684
    %v686 = vpop.f32.mrb[0].mxu0
    %687 = vdwg.mxu0
    %v688 = vld [vmem:[#allocation3 + $0x11] sm:$0xff]
    %v689 = vld [vmem:[#allocation3 + $0x19] sm:$0xff]
    %v690 = vld [vmem:[#allocation3 + $0x21] sm:$0xff]
    %v691 = vld [vmem:[%s4 + $0x40] sm:$0xff]
    %v692 = vld [vmem:[%s4 + $0x48] sm:$0xff]
    %v693 = vld [vmem:[%s4 + $0x50] sm:$0xff]
    %v694 = vld [vmem:[%s4 + $0x58] sm:$0xff]
    %v696 = vsel %vm299, %v688, 0
    %v699 = vsel %vm299, %v689, 0
    %v702 = vsel %vm299, %v690, 0
    %704 = vmatprep.subr.mxu0 0.0
    %705 = vmatpush1.msra.mxu0 %v691
    %706 = vmatprep.subr.mxu0 0.0
    %707 = vmatpush1.msra.mxu0 %v692
    %708 = vmatprep.subr.mxu0 0.0
    %709 = vmatpush1.msra.mxu0 %v693
    %710 = vmatprep.subr.mxu0 0.0
    %711 = vmatpush1.msra.mxu0 %v694
    %712 = vmatprep.subr.mxu0 0.0
    %713 = vmatpush1.msra.mxu0 0.0
    %714 = vmatprep.subr.mxu0 0.0
    %715 = vmatpush1.msra.mxu0 0.0
    %716 = vmatprep.subr.mxu0 0.0
    %717 = vmatpush1.msra.mxu0 0.0
    %718 = vmatprep.subr.mxu0 0.0
    %719 = vmatpush1.msra.mxu0 0.0
    %720 = vmatprep.subr.mxu0 0.0
    %721 = vmatpush1.msra.mxu0 0.0
    %722 = vmatprep.subr.mxu0 0.0
    %723 = vmatpush1.msra.mxu0 0.0
    %724 = vmatprep.subr.mxu0 0.0
    %725 = vmatpush1.msra.mxu0 0.0
    %726 = vmatprep.subr.mxu0 0.0
    %727 = vmatpush1.msra.mxu0 0.0
    %728 = vmatprep.subr.mxu0 0.0
    %729 = vmatpush1.msra.mxu0 0.0
    %730 = vmatprep.subr.mxu0 0.0
    %731 = vmatpush1.msra.mxu0 0.0
    %732 = vmatprep.subr.mxu0 0.0
    %733 = vmatpush1.msra.mxu0 0.0
    %734 = vmatprep.subr.mxu0 0.0
    %735 = vmatpush1.msra.mxu0 0.0
    %736 = vmatprep.subr.mxu0 0.0
    %737 = vmatpush1.msra.mxu0 0.0
    %738 = vmatprep.subr.mxu0 0.0
    %739 = vmatpush1.msra.mxu0 0.0
    %740 = vmatprep.subr.mxu0 0.0
    %741 = vmatpush1.msra.mxu0 0.0
    %742 = vmatprep.subr.mxu0 0.0
    %743 = vmatpush1.msra.mxu0 0.0
    %744 = vmatprep.subr.mxu0 0.0
    %745 = vmatpush1.msra.mxu0 0.0
    %746 = vmatprep.subr.mxu0 0.0
    %747 = vmatpush1.msra.mxu0 0.0
    %748 = vmatprep.subr.mxu0 0.0
    %749 = vmatpush1.msra.mxu0 0.0
    %750 = vmatprep.subr.mxu0 0.0
    %751 = vmatpush1.msra.mxu0 0.0
    %752 = vmatprep.subr.mxu0 0.0
    %753 = vmatpush1.msra.mxu0 0.0
    %754 = vmatprep.subr.mxu0 0.0
    %755 = vmatpush1.msra.mxu0 0.0
    %756 = vmatprep.subr.mxu0 0.0
    %757 = vmatpush1.msra.mxu0 0.0
    %758 = vmatprep.subr.mxu0 0.0
    %759 = vmatpush1.msra.mxu0 0.0
    %760 = vmatprep.subr.mxu0 0.0
    %761 = vmatpush1.msra.mxu0 0.0
    %762 = vmatprep.subr.mxu0 0.0
    %763 = vmatpush1.msra.mxu0 0.0
    %764 = vmatprep.subr.mxu0 0.0
    %765 = vmatpush1.msra.mxu0 0.0
    %766 = vmatprep.subr.mxu0 0.0
    %767 = vmatpush1.msra.mxu0 0.0
    %768 = vmatprep.mubr.f32.mxu0 0.0
    %769 = vmatmul.mubr.f32.gmra.mrb[0].mxu0 %v696
    %v770 = vpop.f32.mrb[0].mxu0
    %v771 = vadd.f32 0.0, %v770
    %v772 = vpop.f32.mrb[0].mxu0
    %773 = vmatprep.mubr.f32.mxu0 0.0
    %774 = vmatmul.mubr.f32.gmra.mrb[0].mxu0 %v699
    %v775 = vpop.f32.mrb[0].mxu0
    %v776 = vadd.f32 0.0, %v775
    %v777 = vpop.f32.mrb[0].mxu0
    %778 = vmatprep.mubr.f32.mxu0 0.0
    %779 = vmatmul.mubr.f32.gmra.mrb[0].mxu0 %v702
    %v780 = vpop.f32.mrb[0].mxu0
    %v781 = vadd.f32 0.0, %v780
    %v782 = vpop.f32.mrb[0].mxu0
    %783 = vdwg.mxu0
    %v784 = vadd.f32 %v675, %v771
    %v785 = vadd.f32 %v680, %v776
    %v786 = vadd.f32 %v685, %v781
    %v787 = vld [vmem:[%s5] sm:$0x1]
    %v789 = vlaneseq
    %v790 = vshrl.u32 %v789, 7
    %v791 = vsub.s32 0, %v790
    %v792 = vrot.slane %v787, %v791
    %v794 = vadd.f32 %v784, %v792
    %v795 = vadd.f32 %v785, %v792
    %v796 = vadd.f32 %v786, %v792
    %v797 = vmax.f32 %v794, 0.0
    %v798 = vmax.f32 %v795, 0.0
    %v799 = vmax.f32 %v796, 0.0
    %v800 = vld [vmem:[%s11] sm:$0xff]
    %v801 = vld [vmem:[%s11 + $0x8] sm:$0xff]
    %v802 = vld [vmem:[%s11 + $0x10] sm:$0xff]
    %804 = vset.pattern.permute.xlu0 0
    %805 = vperm.xlu0 %804, %v800
    %v806 = vpop.permute.xlu0 %805
    %809 = vset.pattern.permute.xlu0 0
    %810 = vperm.xlu0 %809, %v801
    %v811 = vpop.permute.xlu0 %810
    %814 = vset.pattern.permute.xlu0 0
    %815 = vperm.xlu0 %814, %v802
    %v816 = vpop.permute.xlu0 %815
    %v818 = vmul.f32 %v797, %v806
    %v819 = vmul.f32 %v798, %v811
    %v820 = vmul.f32 %v799, %v816
    %vm821 = vcmask 523264
    %822 = vst.msk [vmem:[#allocation4] sm:$0xff] %vm821, 0.0
    %823 = vst.msk [vmem:[#allocation4 + $0x8] sm:$0xff] %vm821, 0.0
    %824 = vst.msk [vmem:[#allocation4 + $0x28] sm:$0xff] %vm821, 0.0
    %825 = vst.msk [vmem:[#allocation4 + $0x30] sm:$0xff] %vm821, 0.0
    %826 = vst.msk [vmem:[#allocation4 + $0x10] sm:$0xff] %vm821, %v818
    %827 = vst.msk [vmem:[#allocation4 + $0x18] sm:$0xff] %vm821, %v819
    %828 = vst.msk [vmem:[#allocation4 + $0x20] sm:$0xff] %vm821, %v820
    %v829 = vld [vmem:[#allocation4 + $0xf] sm:$0xff]
    %v830 = vld [vmem:[#allocation4 + $0x17] sm:$0xff]
    %v831 = vld [vmem:[#allocation4 + $0x1f] sm:$0xff]
    %v832 = vld [vmem:[%s6] sm:$0xff]
    %v833 = vld [vmem:[%s6 + $0x8] sm:$0xff]
    %v834 = vld [vmem:[%s6 + $0x10] sm:$0xff]
    %v835 = vld [vmem:[%s6 + $0x18] sm:$0xff]
    %v836 = vld [vmem:[%s6 + $0x20] sm:$0xff]
    %v837 = vld [vmem:[%s6 + $0x28] sm:$0xff]
    %v838 = vld [vmem:[%s6 + $0x30] sm:$0xff]
    %v839 = vld [vmem:[%s6 + $0x38] sm:$0xff]
    %v840 = vld [vmem:[#allocation4 + $0x10] sm:$0xff]
    %v841 = vld [vmem:[#allocation4 + $0x18] sm:$0xff]
    %v842 = vld [vmem:[#allocation4 + $0x20] sm:$0xff]
    %v843 = vld [vmem:[%s6 + $0x40] sm:$0xff]
    %v844 = vld [vmem:[%s6 + $0x48] sm:$0xff]
    %v845 = vld [vmem:[%s6 + $0x50] sm:$0xff]
    %v846 = vld [vmem:[%s6 + $0x58] sm:$0xff]
    %v847 = vld [vmem:[%s6 + $0x60] sm:$0xff]
    %v848 = vld [vmem:[%s6 + $0x68] sm:$0xff]
    %v849 = vld [vmem:[%s6 + $0x70] sm:$0xff]
    %v850 = vld [vmem:[%s6 + $0x78] sm:$0xff]
    %v852 = vsel %vm821, %v840, 0
    %v855 = vsel %vm821, %v841, 0
    %v858 = vsel %vm821, %v842, 0
    %860 = vmatprep.subr.mxu0 0.0
    %861 = vmatpush1.msra.mxu0 %v843
    %862 = vmatprep.subr.mxu0 0.0
    %863 = vmatpush1.msra.mxu0 %v844
    %864 = vmatprep.subr.mxu0 0.0
    %865 = vmatpush1.msra.mxu0 %v845
    %866 = vmatprep.subr.mxu0 0.0
    %867 = vmatpush1.msra.mxu0 %v846
    %868 = vmatprep.subr.mxu0 0.0
    %869 = vmatpush1.msra.mxu0 %v847
    %870 = vmatprep.subr.mxu0 0.0
    %871 = vmatpush1.msra.mxu0 %v848
    %872 = vmatprep.subr.mxu0 0.0
    %873 = vmatpush1.msra.mxu0 %v849
    %874 = vmatprep.subr.mxu0 0.0
    %875 = vmatpush1.msra.mxu0 %v850
    %876 = vmatprep.subr.mxu0 0.0
    %877 = vmatpush1.msra.mxu0 0.0
    %878 = vmatprep.subr.mxu0 0.0
    %879 = vmatpush1.msra.mxu0 0.0
    %880 = vmatprep.subr.mxu0 0.0
    %881 = vmatpush1.msra.mxu0 0.0
    %882 = vmatprep.subr.mxu0 0.0
    %883 = vmatpush1.msra.mxu0 0.0
    %884 = vmatprep.subr.mxu0 0.0
    %885 = vmatpush1.msra.mxu0 0.0
    %886 = vmatprep.subr.mxu0 0.0
    %887 = vmatpush1.msra.mxu0 0.0
    %888 = vmatprep.subr.mxu0 0.0
    %889 = vmatpush1.msra.mxu0 0.0
    %890 = vmatprep.subr.mxu0 0.0
    %891 = vmatpush1.msra.mxu0 0.0
    %892 = vmatprep.subr.mxu0 0.0
    %893 = vmatpush1.msra.mxu0 0.0
    %894 = vmatprep.subr.mxu0 0.0
    %895 = vmatpush1.msra.mxu0 0.0
    %896 = vmatprep.subr.mxu0 0.0
    %897 = vmatpush1.msra.mxu0 0.0
    %898 = vmatprep.subr.mxu0 0.0
    %899 = vmatpush1.msra.mxu0 0.0
    %900 = vmatprep.subr.mxu0 0.0
    %901 = vmatpush1.msra.mxu0 0.0
    %902 = vmatprep.subr.mxu0 0.0
    %903 = vmatpush1.msra.mxu0 0.0
    %904 = vmatprep.subr.mxu0 0.0
    %905 = vmatpush1.msra.mxu0 0.0
    %906 = vmatprep.subr.mxu0 0.0
    %907 = vmatpush1.msra.mxu0 0.0
    %908 = vmatprep.subr.mxu0 0.0
    %909 = vmatpush1.msra.mxu0 0.0
    %910 = vmatprep.subr.mxu0 0.0
    %911 = vmatpush1.msra.mxu0 0.0
    %912 = vmatprep.subr.mxu0 0.0
    %913 = vmatpush1.msra.mxu0 0.0
    %914 = vmatprep.subr.mxu0 0.0
    %915 = vmatpush1.msra.mxu0 0.0
    %916 = vmatprep.subr.mxu0 0.0
    %917 = vmatpush1.msra.mxu0 0.0
    %918 = vmatprep.subr.mxu0 0.0
    %919 = vmatpush1.msra.mxu0 0.0
    %920 = vmatprep.subr.mxu0 0.0
    %921 = vmatpush1.msra.mxu0 0.0
    %922 = vmatprep.subr.mxu0 0.0
    %923 = vmatpush1.msra.mxu0 0.0
    %924 = vmatprep.mubr.f32.mxu0 0.0
    %925 = vmatmul.mubr.f32.gmra.mrb[0].mxu0 %v852
    %v926 = vpop.f32.mrb[0].mxu0
    %v927 = vadd.f32 0.0, %v926
    %v928 = vpop.f32.mrb[0].mxu0
    %929 = vmatprep.mubr.f32.mxu0 0.0
    %930 = vmatmul.mubr.f32.gmra.mrb[0].mxu0 %v855
    %v931 = vpop.f32.mrb[0].mxu0
    %v932 = vadd.f32 0.0, %v931
    %v933 = vpop.f32.mrb[0].mxu0
    %934 = vmatprep.mubr.f32.mxu0 0.0
    %935 = vmatmul.mubr.f32.gmra.mrb[0].mxu0 %v858
    %v936 = vpop.f32.mrb[0].mxu0
    %v937 = vadd.f32 0.0, %v936
    %v938 = vpop.f32.mrb[0].mxu0
    %939 = vdwg.mxu0
    %v941 = vsel %vm821, %v829, 0
    %v944 = vsel %vm821, %v830, 0
    %v947 = vsel %vm821, %v831, 0
    %949 = vmatprep.subr.mxu0 0.0
    %950 = vmatpush1.msra.mxu0 %v832
    %951 = vmatprep.subr.mxu0 0.0
    %952 = vmatpush1.msra.mxu0 %v833
    %953 = vmatprep.subr.mxu0 0.0
    %954 = vmatpush1.msra.mxu0 %v834
    %955 = vmatprep.subr.mxu0 0.0
    %956 = vmatpush1.msra.mxu0 %v835
    %957 = vmatprep.subr.mxu0 0.0
    %958 = vmatpush1.msra.mxu0 %v836
    %959 = vmatprep.subr.mxu0 0.0
    %960 = vmatpush1.msra.mxu0 %v837
    %961 = vmatprep.subr.mxu0 0.0
    %962 = vmatpush1.msra.mxu0 %v838
    %963 = vmatprep.subr.mxu0 0.0
    %964 = vmatpush1.msra.mxu0 %v839
    %965 = vmatprep.subr.mxu0 0.0
    %966 = vmatpush1.msra.mxu0 0.0
    %967 = vmatprep.subr.mxu0 0.0
    %968 = vmatpush1.msra.mxu0 0.0
    %969 = vmatprep.subr.mxu0 0.0
    %970 = vmatpush1.msra.mxu0 0.0
    %971 = vmatprep.subr.mxu0 0.0
    %972 = vmatpush1.msra.mxu0 0.0
    %973 = vmatprep.subr.mxu0 0.0
    %974 = vmatpush1.msra.mxu0 0.0
    %975 = vmatprep.subr.mxu0 0.0
    %976 = vmatpush1.msra.mxu0 0.0
    %977 = vmatprep.subr.mxu0 0.0
    %978 = vmatpush1.msra.mxu0 0.0
    %979 = vmatprep.subr.mxu0 0.0
    %980 = vmatpush1.msra.mxu0 0.0
    %981 = vmatprep.subr.mxu0 0.0
    %982 = vmatpush1.msra.mxu0 0.0
    %983 = vmatprep.subr.mxu0 0.0
    %984 = vmatpush1.msra.mxu0 0.0
    %985 = vmatprep.subr.mxu0 0.0
    %986 = vmatpush1.msra.mxu0 0.0
    %987 = vmatprep.subr.mxu0 0.0
    %988 = vmatpush1.msra.mxu0 0.0
    %989 = vmatprep.subr.mxu0 0.0
    %990 = vmatpush1.msra.mxu0 0.0
    %991 = vmatprep.subr.mxu0 0.0
    %992 = vmatpush1.msra.mxu0 0.0
    %993 = vmatprep.subr.mxu0 0.0
    %994 = vmatpush1.msra.mxu0 0.0
    %995 = vmatprep.subr.mxu0 0.0
    %996 = vmatpush1.msra.mxu0 0.0
    %997 = vmatprep.subr.mxu0 0.0
    %998 = vmatpush1.msra.mxu0 0.0
    %999 = vmatprep.subr.mxu0 0.0
    %1000 = vmatpush1.msra.mxu0 0.0
    %1001 = vmatprep.subr.mxu0 0.0
    %1002 = vmatpush1.msra.mxu0 0.0
    %1003 = vmatprep.subr.mxu0 0.0
    %1004 = vmatpush1.msra.mxu0 0.0
    %1005 = vmatprep.subr.mxu0 0.0
    %1006 = vmatpush1.msra.mxu0 0.0
    %1007 = vmatprep.subr.mxu0 0.0
    %1008 = vmatpush1.msra.mxu0 0.0
    %1009 = vmatprep.subr.mxu0 0.0
    %1010 = vmatpush1.msra.mxu0 0.0
    %1011 = vmatprep.subr.mxu0 0.0
    %1012 = vmatpush1.msra.mxu0 0.0
    %1013 = vmatprep.mubr.f32.mxu0 0.0
    %1014 = vmatmul.mubr.f32.gmra.mrb[0].mxu0 %v941
    %v1015 = vpop.f32.mrb[0].mxu0
    %v1016 = vadd.f32 %v927, %v1015
    %v1017 = vpop.f32.mrb[0].mxu0
    %1018 = vmatprep.mubr.f32.mxu0 0.0
    %1019 = vmatmul.mubr.f32.gmra.mrb[0].mxu0 %v944
    %v1020 = vpop.f32.mrb[0].mxu0
    %v1021 = vadd.f32 %v932, %v1020
    %v1022 = vpop.f32.mrb[0].mxu0
    %1023 = vmatprep.mubr.f32.mxu0 0.0
    %1024 = vmatmul.mubr.f32.gmra.mrb[0].mxu0 %v947
    %v1025 = vpop.f32.mrb[0].mxu0
    %v1026 = vadd.f32 %v937, %v1025
    %v1027 = vpop.f32.mrb[0].mxu0
    %1028 = vdwg.mxu0
    %v1029 = vld [vmem:[#allocation4 + $0x11] sm:$0xff]
    %v1030 = vld [vmem:[#allocation4 + $0x19] sm:$0xff]
    %v1031 = vld [vmem:[#allocation4 + $0x21] sm:$0xff]
    %v1032 = vld [vmem:[%s6 + $0x80] sm:$0xff]
    %v1033 = vld [vmem:[%s6 + $0x88] sm:$0xff]
    %v1034 = vld [vmem:[%s6 + $0x90] sm:$0xff]
    %v1035 = vld [vmem:[%s6 + $0x98] sm:$0xff]
    %v1036 = vld [vmem:[%s6 + $0xa0] sm:$0xff]
    %v1037 = vld [vmem:[%s6 + $0xa8] sm:$0xff]
    %v1038 = vld [vmem:[%s6 + $0xb0] sm:$0xff]
    %v1039 = vld [vmem:[%s6 + $0xb8] sm:$0xff]
    %v1041 = vsel %vm821, %v1029, 0
    %v1044 = vsel %vm821, %v1030, 0
    %v1047 = vsel %vm821, %v1031, 0
    %1049 = vmatprep.subr.mxu0 0.0
    %1050 = vmatpush1.msra.mxu0 %v1032
    %1051 = vmatprep.subr.mxu0 0.0
    %1052 = vmatpush1.msra.mxu0 %v1033
    %1053 = vmatprep.subr.mxu0 0.0
    %1054 = vmatpush1.msra.mxu0 %v1034
    %1055 = vmatprep.subr.mxu0 0.0
    %1056 = vmatpush1.msra.mxu0 %v1035
    %1057 = vmatprep.subr.mxu0 0.0
    %1058 = vmatpush1.msra.mxu0 %v1036
    %1059 = vmatprep.subr.mxu0 0.0
    %1060 = vmatpush1.msra.mxu0 %v1037
    %1061 = vmatprep.subr.mxu0 0.0
    %1062 = vmatpush1.msra.mxu0 %v1038
    %1063 = vmatprep.subr.mxu0 0.0
    %1064 = vmatpush1.msra.mxu0 %v1039
    %1065 = vmatprep.subr.mxu0 0.0
    %1066 = vmatpush1.msra.mxu0 0.0
    %1067 = vmatprep.subr.mxu0 0.0
    %1068 = vmatpush1.msra.mxu0 0.0
    %1069 = vmatprep.subr.mxu0 0.0
    %1070 = vmatpush1.msra.mxu0 0.0
    %1071 = vmatprep.subr.mxu0 0.0
    %1072 = vmatpush1.msra.mxu0 0.0
    %1073 = vmatprep.subr.mxu0 0.0
    %1074 = vmatpush1.msra.mxu0 0.0
    %1075 = vmatprep.subr.mxu0 0.0
    %1076 = vmatpush1.msra.mxu0 0.0
    %1077 = vmatprep.subr.mxu0 0.0
    %1078 = vmatpush1.msra.mxu0 0.0
    %1079 = vmatprep.subr.mxu0 0.0
    %1080 = vmatpush1.msra.mxu0 0.0
    %1081 = vmatprep.subr.mxu0 0.0
    %1082 = vmatpush1.msra.mxu0 0.0
    %1083 = vmatprep.subr.mxu0 0.0
    %1084 = vmatpush1.msra.mxu0 0.0
    %1085 = vmatprep.subr.mxu0 0.0
    %1086 = vmatpush1.msra.mxu0 0.0
    %1087 = vmatprep.subr.mxu0 0.0
    %1088 = vmatpush1.msra.mxu0 0.0
    %1089 = vmatprep.subr.mxu0 0.0
    %1090 = vmatpush1.msra.mxu0 0.0
    %1091 = vmatprep.subr.mxu0 0.0
    %1092 = vmatpush1.msra.mxu0 0.0
    %1093 = vmatprep.subr.mxu0 0.0
    %1094 = vmatpush1.msra.mxu0 0.0
    %1095 = vmatprep.subr.mxu0 0.0
    %1096 = vmatpush1.msra.mxu0 0.0
    %1097 = vmatprep.subr.mxu0 0.0
    %1098 = vmatpush1.msra.mxu0 0.0
    %1099 = vmatprep.subr.mxu0 0.0
    %1100 = vmatpush1.msra.mxu0 0.0
    %1101 = vmatprep.subr.mxu0 0.0
    %1102 = vmatpush1.msra.mxu0 0.0
    %1103 = vmatprep.subr.mxu0 0.0
    %1104 = vmatpush1.msra.mxu0 0.0
    %1105 = vmatprep.subr.mxu0 0.0
    %1106 = vmatpush1.msra.mxu0 0.0
    %1107 = vmatprep.subr.mxu0 0.0
    %1108 = vmatpush1.msra.mxu0 0.0
    %1109 = vmatprep.subr.mxu0 0.0
    %1110 = vmatpush1.msra.mxu0 0.0
    %1111 = vmatprep.subr.mxu0 0.0
    %1112 = vmatpush1.msra.mxu0 0.0
    %1113 = vmatprep.mubr.f32.mxu0 0.0
    %1114 = vmatmul.mubr.f32.gmra.mrb[0].mxu0 %v1041
    %v1115 = vpop.f32.mrb[0].mxu0
    %v1116 = vadd.f32 0.0, %v1115
    %v1117 = vpop.f32.mrb[0].mxu0
    %1118 = vmatprep.mubr.f32.mxu0 0.0
    %1119 = vmatmul.mubr.f32.gmra.mrb[0].mxu0 %v1044
    %v1120 = vpop.f32.mrb[0].mxu0
    %v1121 = vadd.f32 0.0, %v1120
    %v1122 = vpop.f32.mrb[0].mxu0
    %1123 = vmatprep.mubr.f32.mxu0 0.0
    %1124 = vmatmul.mubr.f32.gmra.mrb[0].mxu0 %v1047
    %v1125 = vpop.f32.mrb[0].mxu0
    %v1126 = vadd.f32 0.0, %v1125
    %v1127 = vpop.f32.mrb[0].mxu0
    %1128 = vdwg.mxu0
    %v1129 = vadd.f32 %v1016, %v1116
    %v1130 = vadd.f32 %v1021, %v1121
    %v1131 = vadd.f32 %v1026, %v1126
    %v1132 = vld [vmem:[%s7] sm:$0x1]
    %v1134 = vlaneseq
    %v1135 = vshrl.u32 %v1134, 7
    %v1136 = vsub.s32 0, %v1135
    %v1137 = vrot.slane %v1132, %v1136
    %v1139 = vadd.f32 %v1129, %v1137
    %v1140 = vadd.f32 %v1130, %v1137
    %v1141 = vadd.f32 %v1131, %v1137
    %v1142 = vmax.f32 %v1139, 0.0
    %v1143 = vmax.f32 %v1140, 0.0
    %v1144 = vmax.f32 %v1141, 0.0
    %1145 = vst.msk [vmem:[#allocation5] sm:$0xff] %vm821, %v1142
    %1146 = vst.msk [vmem:[#allocation5 + $0x8] sm:$0xff] %vm821, %v1143
    %1147 = vst.msk [vmem:[#allocation5 + $0x10] sm:$0xff] %vm821, %v1144
    %s1148 = scalar_lea.vmem [#allocation5], 1
    %v1149 = vld [vmem:[%s1148] ss:$12 sm:$0x3]
    %s1150 = scalar_lea.vmem [#allocation5], 2
    %v1151 = vld [vmem:[%s1150] ss:$12 sm:$0x3]
    %v1152 = vadd.f32 %v1149, %v1151
    %s1153 = scalar_lea.vmem [#allocation5], 3
    %v1154 = vld [vmem:[%s1153] ss:$12 sm:$0x3]
    %v1155 = vadd.f32 %v1152, %v1154
    %s1156 = scalar_lea.vmem [#allocation5], 4
    %v1157 = vld [vmem:[%s1156] ss:$12 sm:$0x3]
    %v1158 = vadd.f32 %v1155, %v1157
    %s1159 = scalar_lea.vmem [#allocation5], 5
    %v1160 = vld [vmem:[%s1159] ss:$12 sm:$0x3]
    %v1161 = vadd.f32 %v1158, %v1160
    %s1162 = scalar_lea.vmem [#allocation5], 6
    %v1163 = vld [vmem:[%s1162] ss:$12 sm:$0x3]
    %v1164 = vadd.f32 %v1161, %v1163
    %s1165 = scalar_lea.vmem [#allocation5], 7
    %v1166 = vld [vmem:[%s1165] ss:$12 sm:$0x3]
    %v1167 = vadd.f32 %v1164, %v1166
    %s1168 = scalar_lea.vmem [#allocation5], 8
    %v1169 = vld [vmem:[%s1168] ss:$12 sm:$0x3]
    %v1170 = vadd.f32 %v1167, %v1169
    %v1171 = vmul.f32 %v1170, 0.125
    %v1172 = vld [vmem:[%s8] sm:$0xff]
    %v1173 = vld [vmem:[%s8 + $0x8] sm:$0xff]
    %v1174 = vld [vmem:[%s8 + $0x10] sm:$0xff]
    %v1175 = vld [vmem:[%s8 + $0x18] sm:$0xff]
    %v1176 = vld [vmem:[%s8 + $0x20] sm:$0xff]
    %v1177 = vld [vmem:[%s8 + $0x28] sm:$0xff]
    %v1178 = vld [vmem:[%s8 + $0x30] sm:$0xff]
    %v1179 = vld [vmem:[%s8 + $0x38] sm:$0xff]
    %v1180 = vld [vmem:[%s9] sm:$0x1]
    %v1182 = vlaneseq
    %v1183 = vshrl.u32 %v1182, 7
    %v1184 = vsub.s32 0, %v1183
    %v1185 = vrot.slane %v1180, %v1184
    %v1188 = vsel %vm821, %v1171, 0
    %1190 = vmatprep.subr.mxu0 0.0
    %1191 = vmatpush1.msra.mxu0 %v1172
    %1192 = vmatprep.subr.mxu0 0.0
    %1193 = vmatpush1.msra.mxu0 %v1173
    %1194 = vmatprep.subr.mxu0 0.0
    %1195 = vmatpush1.msra.mxu0 %v1174
    %1196 = vmatprep.subr.mxu0 0.0
    %1197 = vmatpush1.msra.mxu0 %v1175
    %1198 = vmatprep.subr.mxu0 0.0
    %1199 = vmatpush1.msra.mxu0 %v1176
    %1200 = vmatprep.subr.mxu0 0.0
    %1201 = vmatpush1.msra.mxu0 %v1177
    %1202 = vmatprep.subr.mxu0 0.0
    %1203 = vmatpush1.msra.mxu0 %v1178
    %1204 = vmatprep.subr.mxu0 0.0
    %1205 = vmatpush1.msra.mxu0 %v1179
    %1206 = vmatprep.subr.mxu0 0.0
    %1207 = vmatpush1.msra.mxu0 0.0
    %1208 = vmatprep.subr.mxu0 0.0
    %1209 = vmatpush1.msra.mxu0 0.0
    %1210 = vmatprep.subr.mxu0 0.0
    %1211 = vmatpush1.msra.mxu0 0.0
    %1212 = vmatprep.subr.mxu0 0.0
    %1213 = vmatpush1.msra.mxu0 0.0
    %1214 = vmatprep.subr.mxu0 0.0
    %1215 = vmatpush1.msra.mxu0 0.0
    %1216 = vmatprep.subr.mxu0 0.0
    %1217 = vmatpush1.msra.mxu0 0.0
    %1218 = vmatprep.subr.mxu0 0.0
    %1219 = vmatpush1.msra.mxu0 0.0
    %1220 = vmatprep.subr.mxu0 0.0
    %1221 = vmatpush1.msra.mxu0 0.0
    %1222 = vmatprep.subr.mxu0 0.0
    %1223 = vmatpush1.msra.mxu0 0.0
    %1224 = vmatprep.subr.mxu0 0.0
    %1225 = vmatpush1.msra.mxu0 0.0
    %1226 = vmatprep.subr.mxu0 0.0
    %1227 = vmatpush1.msra.mxu0 0.0
    %1228 = vmatprep.subr.mxu0 0.0
    %1229 = vmatpush1.msra.mxu0 0.0
    %1230 = vmatprep.subr.mxu0 0.0
    %1231 = vmatpush1.msra.mxu0 0.0
    %1232 = vmatprep.subr.mxu0 0.0
    %1233 = vmatpush1.msra.mxu0 0.0
    %1234 = vmatprep.subr.mxu0 0.0
    %1235 = vmatpush1.msra.mxu0 0.0
    %1236 = vmatprep.subr.mxu0 0.0
    %1237 = vmatpush1.msra.mxu0 0.0
    %1238 = vmatprep.subr.mxu0 0.0
    %1239 = vmatpush1.msra.mxu0 0.0
    %1240 = vmatprep.subr.mxu0 0.0
    %1241 = vmatpush1.msra.mxu0 0.0
    %1242 = vmatprep.subr.mxu0 0.0
    %1243 = vmatpush1.msra.mxu0 0.0
    %1244 = vmatprep.subr.mxu0 0.0
    %1245 = vmatpush1.msra.mxu0 0.0
    %1246 = vmatprep.subr.mxu0 0.0
    %1247 = vmatpush1.msra.mxu0 0.0
    %1248 = vmatprep.subr.mxu0 0.0
    %1249 = vmatpush1.msra.mxu0 0.0
    %1250 = vmatprep.subr.mxu0 0.0
    %1251 = vmatpush1.msra.mxu0 0.0
    %1252 = vmatprep.subr.mxu0 0.0
    %1253 = vmatpush1.msra.mxu0 0.0
    %1254 = vmatprep.mubr.f32.mxu0 0.0
    %1255 = vmatmul.mubr.f32.gmra.mrb[0].mxu0 %v1188
    %v1256 = vpop.f32.mrb[0].mxu0
    %v1257 = vadd.f32 %v1185, %v1256
    %v1258 = vpop.f32.mrb[0].mxu0
    %1259 = vdwg.mxu0
    %vm1260 = vcmask 9216
    %1261 = vst.msk [vmem:[#allocation6] sm:$0x3] %vm1260, %v1257
    // Predicated region
    $region50: #{tpu_custom_call.1} parent=1 // pred_check
      _
    $region51: #{tpu_custom_call.1} parent=1 // pred_check_branch
      %1263 = sbr.rel (0) target = $region53
    $region52: #{tpu_custom_call.1} parent=1 // pred_region
      %s1265 = ssub.s32 32, 32
      %1266 = vsyncadd [#allocation7], %s1265
      %s1268 = sshll.u32 [#allocation6], 4
      %s1269 = int_to_ptr.vmem [resolvable:$true] %s1268
      %1271 = dma.vmem_to_hbm [thread:$0]  %s1269, 32, %s12, [#allocation7]
    $region53: #{tpu_custom_call.1} parent=1 // pred_fallthru
      _
    // Predicated region
    $region54: #{tpu_custom_call.1} parent=1 // pred_check
      _
    $region55: #{tpu_custom_call.1} parent=1 // pred_check_branch
      %1273 = sbr.rel (0) target = $region57
    $region56: #{tpu_custom_call.1} parent=1 // pred_region
      %1274 = dma.done [#allocation7], 32
    $region57: #{tpu_custom_call.1} parent=1 // pred_fallthru
      _
    %1275 = vsyncpa [#allocation7], 1

</llo_original>
